<compile_context>
chip_gen: v7x
topology: tpu7x:2x2x1
jax: 0.10.0
libtpu: 0.0.40
codegen_flags: <defaults>
</compile_context>

<pallas_src>
import functools

import jax
import jax.numpy as jnp
from jax import lax
from jax.experimental import pallas as pl
from jax.experimental.pallas import tpu as pltpu

_MIB = 1024 * 1024


# ----------------------------------------------------------------------------- kernels
def _upconv_bn_kernel_2dot(x_ref, w0_ref, w1_ref, s_ref, o_ref):
    """ConvT(k=2,s=2)+BN for one row tile; two MXU passes (one per kh parity).

    x_ref:  (TR*Wp, Cin)        flattened input pixels (compute dtype)
    w0_ref: (Cin, 2*Cout)       BN-folded weights for kh=0, cols ordered (kw, co)
    w1_ref: (Cin, 2*Cout)       kh=1
    s_ref:  (1, 2*Cout)         fused bias + BN shift (f32)
    o_ref:  (TR, 2, Wp, 2*Cout) output; memory order == NHWC (n, 2h+kh, 2w+kw, co)
    """
    tr, _, wp, two_cout = o_ref.shape
    x2d = x_ref[...]
    a0 = jnp.dot(x2d, w0_ref[...], preferred_element_type=jnp.float32) + s_ref[...]
    a1 = jnp.dot(x2d, w1_ref[...], preferred_element_type=jnp.float32) + s_ref[...]
    # Reshape the f32 accumulator first (layout-preserving: Wp % 8 == 0 or TR == 1),
    # cast to the narrow output dtype only at the store.
    o_ref[:, 0, :, :] = a0.reshape(tr, wp, two_cout).astype(o_ref.dtype)
    o_ref[:, 1, :, :] = a1.reshape(tr, wp, two_cout).astype(o_ref.dtype)


def _upconv_bn_kernel_fused(x_ref, wcat_ref, scat_ref, o_ref):
    """Same op, single (Cin, 4*Cout) matmul -> fills the 256-wide MXU (v6e/v7x).

    Used only when 2*Cout % 128 == 0 so the lane split below is a clean vreg slice.
    """
    tr, _, wp, two_cout = o_ref.shape
    acc = jnp.dot(x_ref[...], wcat_ref[...],
                  preferred_element_type=jnp.float32) + scat_ref[...]
    o_ref[:, 0, :, :] = acc[:, :two_cout].reshape(tr, wp, two_cout).astype(o_ref.dtype)
    o_ref[:, 1, :, :] = acc[:, two_cout:].reshape(tr, wp, two_cout).astype(o_ref.dtype)


# ----------------------------------------------------------------------------- helpers
def _largest_divisor_at_most(n, k):
    k = max(1, min(n, k))
    for d in range(k, 0, -1):
        if n % d == 0:
            return d
    return 1


def _default_vmem_limit_bytes():
    """Generation-aware scoped-VMEM limit (v5e/v6e: 64 MiB of 128; v7x: 40 of 64)."""
    try:
        cap = int(pltpu.get_tpu_info().vmem_capacity_bytes)
    except Exception:
        cap = 64 * _MIB  # conservative (v7x-sized) fallback
    return min((cap * 5) // 8, 64 * _MIB)


# ----------------------------------------------------------------------------- wrappers
def upsampling_up_nhwc(x_nhwc, params, *, compute_dtype=jnp.bfloat16, out_dtype=None,
                       eps=1e-5, vmem_limit_bytes=None, max_block_m=65536):
    """ConvTranspose2d(k=2,s=2) + BatchNorm2d (running stats) on NHWC input.

    Returns the upsampled NHWC tensor of shape (N, 2H, 2W, Cout) in `out_dtype`
    (defaults to `compute_dtype`).
    """
    if out_dtype is None:
        out_dtype = compute_dtype
    if vmem_limit_bytes is None:
        vmem_limit_bytes = _default_vmem_limit_bytes()

    w = params["weight"].astype(jnp.float32)          # (Cin, Cout, 2, 2)
    b = params["bias"].astype(jnp.float32)            # (Cout,)
    gamma = params["gamma"].astype(jnp.float32)
    beta = params["beta"].astype(jnp.float32)
    mean = params["running_mean"].astype(jnp.float32)
    var = params["running_var"].astype(jnp.float32)

    N, H, W, Cin = x_nhwc.shape
    Cout = w.shape[1]
    R = N * H
    two_cout = 2 * Cout

    # ---- fold BatchNorm into the conv weights / bias (host-side, tiny) ----
    scale = gamma / jnp.sqrt(var + eps)                       # (Cout,)
    shift = b * scale + beta - mean * scale                   # (Cout,)
    # (Cin, Cout, kh, kw) -> (kh, Cin, kw, Cout), BN scale folded along Cout.
    w_khw = jnp.transpose(w, (2, 0, 3, 1)) * scale
    w0 = w_khw[0].reshape(Cin, two_cout).astype(compute_dtype)   # col = kw*Cout + co
    w1 = w_khw[1].reshape(Cin, two_cout).astype(compute_dtype)

    fused_mxu = (two_cout % 128) == 0
    if fused_mxu:
        w_args = (jnp.concatenate([w0, w1], axis=1),             # (Cin, 4*Cout)
                  jnp.tile(shift, 4).reshape(1, 4 * Cout))
        kernel = _upconv_bn_kernel_fused
        w_specs = [pl.BlockSpec((Cin, 4 * Cout), lambda i: (0, 0)),
                   pl.BlockSpec((1, 4 * Cout), lambda i: (0, 0))]
    else:
        w_args = (w0, w1, jnp.tile(shift, 2).reshape(1, two_cout))
        kernel = _upconv_bn_kernel_2dot
        w_specs = [pl.BlockSpec((Cin, two_cout), lambda i: (0, 0)),
                   pl.BlockSpec((Cin, two_cout), lambda i: (0, 0)),
                   pl.BlockSpec((1, two_cout), lambda i: (0, 0))]

    # ---- input as flattened (R*Wp, Cin) pixels; pad W to a sublane multiple so
    # the in-kernel f32 reshape stays layout-preserving for TR > 1 ----
    W_pad = W if W % 8 == 0 else ((W + 7) // 8) * 8
    x = x_nhwc.astype(compute_dtype)
    if W_pad != W:
        x = jnp.pad(x, ((0, 0), (0, 0), (0, W_pad - W), (0, 0)))
    x_flat = x.reshape(R * W_pad, Cin)                        # free reshape of NHWC

    # ---- pick the row-tile TR from the scoped-VMEM budget ----
    in_itemsize = jnp.dtype(compute_dtype).itemsize
    out_itemsize = jnp.dtype(out_dtype).itemsize
    resident = 2 * sum(int(a.size) * a.dtype.itemsize for a in w_args)  # 2-buffer default
    per_row = W_pad * Cin * in_itemsize + 2 * W_pad * two_cout * out_itemsize
    budget = max(2 * per_row, int(vmem_limit_bytes) - resident - 4 * _MIB)
    tr_budget = max(1, budget // (2 * per_row))               # x/out double-buffered
    tr_cap = min(tr_budget, max(1, max_block_m // W_pad), max(1, R // 2))
    tr = _largest_divisor_at_most(R, tr_cap)
    grid = (R // tr,)

    # ---- cost estimate (memory-bound; flops = 2*M*Cin*4*Cout) ----
    flops = 2 * R * W_pad * Cin * 4 * Cout
    bytes_accessed = (int(x_flat.size) * in_itemsize
                      + sum(int(a.size) * a.dtype.itemsize for a in w_args)
                      + R * 2 * W_pad * two_cout * out_itemsize)

    up_rows = pl.pallas_call(
        kernel,
        out_shape=jax.ShapeDtypeStruct((R, 2, W_pad, two_cout), out_dtype),
        grid=grid,
        in_specs=[pl.BlockSpec((tr * W_pad, Cin), lambda i: (i, 0))] + w_specs,
        out_specs=pl.BlockSpec((tr, 2, W_pad, two_cout), lambda i: (i, 0, 0, 0)),
        compiler_params=pltpu.CompilerParams(
            dimension_semantics=("parallel",),
            vmem_limit_bytes=int(vmem_limit_bytes)),
        cost_estimate=pl.CostEstimate(
            flops=int(flops), transcendentals=0, bytes_accessed=int(bytes_accessed)),
    )(x_flat, *w_args)

    # (R, 2, Wp, 2*Cout) memory order == NHWC (n, 2h+kh, 2w+kw, co): free reshape.
    up = up_rows.reshape(N, 2 * H, 2 * W_pad, Cout)
    if W_pad != W:
        up = up[:, :, :2 * W, :]                              # crop padded columns
    return up


def upsampling_forward_nhwc(x_nhwc, y_nhwc, params, **kwargs):
    """UpSampling.forward in NHWC layout (preferred on TPU)."""
    up = upsampling_up_nhwc(x_nhwc, params, **kwargs)
    diff_y = y_nhwc.shape[1] - up.shape[1]
    diff_x = y_nhwc.shape[2] - up.shape[2]
    if diff_y != 0 or diff_x != 0:
        # lax.pad supports negative padding (crop), matching F.pad semantics exactly.
        up = lax.pad(
            up, jnp.array(0, dtype=up.dtype),
            ((0, 0, 0),
             (diff_y // 2, diff_y - diff_y // 2, 0),
             (diff_x // 2, diff_x - diff_x // 2, 0),
             (0, 0, 0)))
    # torch.cat([y, x], dim=1) == channel-concat in NHWC; the narrow->y.dtype
    # convert fuses into the same copy pass.
    return jnp.concatenate([y_nhwc, up.astype(y_nhwc.dtype)], axis=-1)


def upsampling_forward(x_nchw, y_nchw, params, **kwargs):
    """PyTorch-compatible NCHW wrapper around the NHWC implementation."""
    x_nhwc = jnp.transpose(x_nchw, (0, 2, 3, 1))
    y_nhwc = jnp.transpose(y_nchw, (0, 2, 3, 1))
    out_nhwc = upsampling_forward_nhwc(x_nhwc, y_nhwc, params, **kwargs)
    return jnp.transpose(out_nhwc, (0, 3, 1, 2))


# ----------------------------------------------------------------------------- reference
def _reference_forward(x_nchw, y_nchw, params, eps=1e-5):
    """Pure-JAX f32 reference (einsum-based, highest precision)."""
    w = params["weight"]; b = params["bias"]
    gamma = params["gamma"]; beta = params["beta"]
    mean = params["running_mean"]; var = params["running_var"]
    N, Cin, H, W = x_nchw.shape
    Cout = w.shape[1]
    x_nhwc = jnp.transpose(x_nchw, (0, 2, 3, 1))
    conv = jnp.einsum("nhwi,iokl->nhkwlo", x_nhwc, w,
                      preferred_element_type=jnp.float32,
                      precision=lax.Precision.HIGHEST)
    conv = conv.reshape(N, 2 * H, 2 * W, Cout) + b
    bn = (conv - mean) / jnp.sqrt(var + eps) * gamma + beta
    diff_y = y_nchw.shape[2] - bn.shape[1]
    diff_x = y_nchw.shape[3] - bn.shape[2]
    bn = lax.pad(bn, jnp.float32(0),
                 ((0, 0, 0),
                  (diff_y // 2, diff_y - diff_y // 2, 0),
                  (diff_x // 2, diff_x - diff_x // 2, 0),
                  (0, 0, 0)))
    y_nhwc = jnp.transpose(y_nchw, (0, 2, 3, 1))
    out = jnp.concatenate([y_nhwc, bn], axis=-1)
    return jnp.transpose(out, (0, 3, 1, 2))


# ----------------------------------------------------------------------------- test
if __name__ == "__main__":
    def make_case(seed, N, Cin, H, W, Cout, yC, yH, yW, w_scale):
        ks = jax.random.split(jax.random.PRNGKey(seed), 8)
        x = jax.random.normal(ks[0], (N, Cin, H, W), dtype=jnp.float32)
        y = jax.random.normal(ks[1], (N, yC, yH, yW), dtype=jnp.float32)
        params = {
            # nn.ConvTranspose2d weight layout: (in_channels, out_channels, kH, kW)
            "weight": jax.random.normal(ks[2], (Cin, Cout, 2, 2), jnp.float32) * w_scale,
            "bias": 0.1 * jax.random.normal(ks[3], (Cout,), jnp.float32),
            # BatchNorm2d (inference-mode running stats)
            "gamma": 1.0 + 0.1 * jax.random.normal(ks[4], (Cout,), jnp.float32),
            "beta": 0.1 * jax.random.normal(ks[5], (Cout,), jnp.float32),
            "running_mean": 0.1 * jax.random.normal(ks[6], (Cout,), jnp.float32),
            "running_var": jnp.abs(1.0 + 0.1 * jax.random.normal(ks[7], (Cout,), jnp.float32)),
        }
        return x, y, params

    def check(name, x, y, params, compute_dtype, atol, rtol):
        ref = _reference_forward(x, y, params)
        fwd = jax.jit(functools.partial(upsampling_forward, compute_dtype=compute_dtype))
        out = jax.block_until_ready(fwd(x, y, params))
        assert out.shape == ref.shape, (name, out.shape, ref.shape)
        err = float(jnp.max(jnp.abs(out - ref)))
        assert jnp.allclose(out, ref, atol=atol, rtol=rtol), f"{name} mismatch, max err {err}"

    # 1) small channels, even W -> two-dot kernel path + pad-and-concat epilogue.
    x, y, p = make_case(0, 2, 8, 32, 32, 4, 4, 66, 65, 0.1)
    check("case1_f32", x, y, p, jnp.float32, 2e-4, 2e-4)     # exact-semantics path
    check("case1_bf16", x, y, p, jnp.bfloat16, 5e-2, 5e-2)   # fast path (bf16 in/out)

    # 2) 2*Cout == 128 -> fused single-matmul path (fills the 256-wide MXU); no pad.
    x, y, p = make_case(1, 1, 32, 16, 16, 64, 8, 32, 32, 0.05)
    check("case2_f32", x, y, p, jnp.float32, 2e-4, 2e-4)
    check("case2_bf16", x, y, p, jnp.bfloat16, 6e-2, 6e-2)

    # 3) odd W (W % 8 != 0) -> host-side W padding + post-kernel crop (no TR=1 cliff).
    x, y, p = make_case(2, 1, 8, 16, 33, 4, 4, 34, 67, 0.1)
    check("case3_f32", x, y, p, jnp.float32, 2e-4, 2e-4)

    print("KERNEL_OK")
</pallas_src>

<mosaic_0001>
module attributes {stable_mosaic.version = 11 : i64} {
  func.func @_upconv_bn_kernel_2dot(%arg0: i32, %arg1: memref<1024x8xf32, #tpu.memory_space<vmem>>, %arg2: memref<8x8xf32, #tpu.memory_space<vmem>>, %arg3: memref<8x8xf32, #tpu.memory_space<vmem>>, %arg4: memref<1x8xf32, #tpu.memory_space<vmem>>, %arg5: memref<32x2x32x8xf32, #tpu.memory_space<vmem>>) attributes {dimension_semantics = [#tpu.dimension_semantics<parallel>], iteration_bounds = array<i64: 2>, scalar_prefetch = 0 : i64, scratch_operands = 0 : i64, tpu.core_type = #tpu.core_type<tc>, window_params = [{transform_indices = @transform_0, window_bounds = array<i64: 1024, 8>}, {pipeline_mode = #tpu.pipeline_mode<synchronous>, transform_indices = @transform_1, window_bounds = array<i64: 8, 8>}, {pipeline_mode = #tpu.pipeline_mode<synchronous>, transform_indices = @transform_2, window_bounds = array<i64: 8, 8>}, {pipeline_mode = #tpu.pipeline_mode<synchronous>, transform_indices = @transform_3, window_bounds = array<i64: 1, 8>}, {transform_indices = @transform_4, window_bounds = array<i64: 32, 2, 32, 8>}]} {
    %c0 = arith.constant 0 : index
    %c0_0 = arith.constant 0 : index
    %0 = vector.load %arg1[%c0, %c0_0] : memref<1024x8xf32, #tpu.memory_space<vmem>>, vector<1024x8xf32>
    %c0_1 = arith.constant 0 : index
    %c0_2 = arith.constant 0 : index
    %1 = vector.load %arg2[%c0_1, %c0_2] : memref<8x8xf32, #tpu.memory_space<vmem>>, vector<8x8xf32>
    %cst = arith.constant dense<0.000000e+00> : vector<1024x8xf32>
    %2 = tpu.matmul %0, %1, %cst {dimension_numbers = #tpu.dot_dimension_numbers<[1], [0], [0], [1], [0, 0, 1, 1], [], []>} : vector<1024x8xf32>, vector<8x8xf32>, vector<1024x8xf32> -> vector<1024x8xf32>
    %c0_3 = arith.constant 0 : index
    %c0_4 = arith.constant 0 : index
    %3 = vector.load %arg4[%c0_3, %c0_4] : memref<1x8xf32, #tpu.memory_space<vmem>>, vector<1x8xf32>
    %4 = vector.broadcast %3 : vector<1x8xf32> to vector<1024x8xf32>
    %5 = arith.addf %2, %4 : vector<1024x8xf32>
    %c0_5 = arith.constant 0 : index
    %c0_6 = arith.constant 0 : index
    %6 = vector.load %arg3[%c0_5, %c0_6] : memref<8x8xf32, #tpu.memory_space<vmem>>, vector<8x8xf32>
    %cst_7 = arith.constant dense<0.000000e+00> : vector<1024x8xf32>
    %7 = tpu.matmul %0, %6, %cst_7 {dimension_numbers = #tpu.dot_dimension_numbers<[1], [0], [0], [1], [0, 0, 1, 1], [], []>} : vector<1024x8xf32>, vector<8x8xf32>, vector<1024x8xf32> -> vector<1024x8xf32>
    %c0_8 = arith.constant 0 : index
    %c0_9 = arith.constant 0 : index
    %8 = vector.load %arg4[%c0_8, %c0_9] : memref<1x8xf32, #tpu.memory_space<vmem>>, vector<1x8xf32>
    %9 = vector.broadcast %8 : vector<1x8xf32> to vector<1024x8xf32>
    %10 = arith.addf %7, %9 : vector<1024x8xf32>
    %11 = vector.shape_cast %5 : vector<1024x8xf32> to vector<32x32x8xf32>
    %c0_10 = arith.constant 0 : index
    %c0_11 = arith.constant 0 : index
    %c0_12 = arith.constant 0 : index
    %c0_13 = arith.constant 0 : index
    %12 = vector.load %arg5[%c0_10, %c0_11, %c0_12, %c0_13] : memref<32x2x32x8xf32, #tpu.memory_space<vmem>>, vector<32x1x32x8xf32>
    %13 = vector.shape_cast %12 : vector<32x1x32x8xf32> to vector<32x32x8xf32>
    %14 = vector.shape_cast %11 : vector<32x32x8xf32> to vector<32x1x32x8xf32>
    tpu.vector_store %arg5[%c0_10, %c0_11, %c0_12, %c0_13], %14 {strides = array<i32>} : memref<32x2x32x8xf32, #tpu.memory_space<vmem>>, vector<32x1x32x8xf32>,
    %15 = vector.shape_cast %10 : vector<1024x8xf32> to vector<32x32x8xf32>
    %c0_14 = arith.constant 0 : index
    %c1 = arith.constant 1 : index
    %c0_15 = arith.constant 0 : index
    %c0_16 = arith.constant 0 : index
    %16 = vector.load %arg5[%c0_14, %c1, %c0_15, %c0_16] : memref<32x2x32x8xf32, #tpu.memory_space<vmem>>, vector<32x1x32x8xf32>
    %17 = vector.shape_cast %16 : vector<32x1x32x8xf32> to vector<32x32x8xf32>
    %18 = vector.shape_cast %15 : vector<32x32x8xf32> to vector<32x1x32x8xf32>
    tpu.vector_store %arg5[%c0_14, %c1, %c0_15, %c0_16], %18 {strides = array<i32>} : memref<32x2x32x8xf32, #tpu.memory_space<vmem>>, vector<32x1x32x8xf32>,
    return
  }
  func.func @transform_0(%arg0: i32) -> (i32, i32) {
    %c0_i32 = arith.constant 0 : i32
    %c0_i32_0 = arith.constant 0 : i32
    return %arg0, %c0_i32 : i32, i32
  }
  func.func @transform_1(%arg0: i32) -> (i32, i32) {
    %c0_i32 = arith.constant 0 : i32
    %c0_i32_0 = arith.constant 0 : i32
    %c0_i32_1 = arith.constant 0 : i32
    return %c0_i32, %c0_i32_0 : i32, i32
  }
  func.func @transform_2(%arg0: i32) -> (i32, i32) {
    %c0_i32 = arith.constant 0 : i32
    %c0_i32_0 = arith.constant 0 : i32
    %c0_i32_1 = arith.constant 0 : i32
    return %c0_i32, %c0_i32_0 : i32, i32
  }
  func.func @transform_3(%arg0: i32) -> (i32, i32) {
    %c0_i32 = arith.constant 0 : i32
    %c0_i32_0 = arith.constant 0 : i32
    %c0_i32_1 = arith.constant 0 : i32
    return %c0_i32, %c0_i32_0 : i32, i32
  }
  func.func @transform_4(%arg0: i32) -> (i32, i32, i32, i32) {
    %c0_i32 = arith.constant 0 : i32
    %c0_i32_0 = arith.constant 0 : i32
    %c0_i32_1 = arith.constant 0 : i32
    %c0_i32_2 = arith.constant 0 : i32
    return %arg0, %c0_i32, %c0_i32_0, %c0_i32_1 : i32, i32, i32, i32
  }
}

</mosaic_0001>

<llo_original>
// kernel: tile.8
$region0: #{tile.8}
  #allocation0 [shape = 's32[1]{0}', space=sflag, size = 0x4, scoped, tag = 'scoped memory for tile.8']
  %s0 = inlined_call_operand.vmem [shape: f32[4], index: 0, kind: input, shape index: {}]
  %s1 = inlined_call_operand.vmem [shape: f32[2,4], index: 1, kind: output, shape index: {}]
  // Predicated region
  $region2: #{tile.8} parent=0 // pred_check
    _
  $region3: #{tile.8} parent=0 // pred_check_branch
    %3 = sbr.rel (0) target = $region5
  $region4: #{tile.8} parent=0 // pred_region
    _
  $region5: #{tile.8} parent=0 // pred_fallthru
    _
  %v4 = vld [vmem:[%s0] ss:$0 sm:$0xff]
  %5 = vst [vmem:[%s1] sm:$0x3] %v4

// kernel: tile.9
$region0: #{tile.9}
  %s0 = inlined_call_operand.vmem [shape: f32[2,4], index: 0, kind: input, shape index: {}]
  %s1 = inlined_call_operand.vmem [shape: f32[1,8], index: 1, kind: output, shape index: {}]
  $region1: #{tile.9} parent=0
    #allocation0 [shape = 'u8[4096]{0}', space=vmem, size = 0x1000, scoped, tag = 'scoped mem for output reshape']
    #allocation1 [shape = 'u8[4096]{0}', space=vmem, size = 0x1000, scoped, tag = 'scoped mem for input reshape']
    %s3 = sshllo.u32 0, 2
    %v4 = vld [vmem:[%s0] sm:%s3]
    %5 = vst [vmem:[#allocation1] sm:%s3] %v4
    %v6 = vld [vmem:[#allocation1] sm:$0x1]
    %vm7 = vcmask 31744
    %8 = vst.msk [vmem:[#allocation0] sm:$0x1] %vm7, %v6
    %s9 = scalar_lea.vmem [#allocation1], 1
    %v10 = vld [vmem:[%s9] sm:$0x1]
    %11 = vrot.lane.b32.xlu0 %v10, 4
    %v12 = vpop.permute.xlu0 %11
    %vm13 = vcmask 64544
    %14 = vst.msk [vmem:[#allocation0] sm:$0x1] %vm13, %v12
    %s16 = sshllo.u32 0, 1
    %v18 = vld [vmem:[#allocation0] sm:%s16]
    %s19 = sshllo.u32 0, 1
    %20 = vst [vmem:[%s1] sm:%s19] %v18

// kernel: upsampling_forward.1
$region0: #{upsampling_forward.1}
  #allocation0 [shape = 'u32[]', space=smem, size = 0x4, offset = 0x4, fixed_abs, tag = 'smem constant byte address 0x4 - core index']
  #allocation1 [shape = 'u32[144,128]{1,0:T(1,128)}', space=vmem, size = 0x12000, scoped, tag = 'internal scratch']
  %s0 = inlined_call_operand.vmem [shape: f32[2048,8], index: 0, kind: input, shape index: {}]
  %s1 = inlined_call_operand.vmem [shape: f32[8,8], index: 1, kind: input, shape index: {}]
  %s2 = inlined_call_operand.vmem [shape: f32[8,8], index: 2, kind: input, shape index: {}]
  %s3 = inlined_call_operand.vmem [shape: f32[1,8], index: 3, kind: input, shape index: {}]
  %s4 = inlined_call_operand.vmem [shape: f32[64,2,32,8], index: 4, kind: output, shape index: {}]
  %s5 = sld [smem:[#allocation0]]
  $region49: #{upsampling_forward.1} parent=0
    _
  %s7 = ssub.s32 1, %s5
  %s8 = scalar_select 0, %s7, %s5
  loop: start=0, step=1, limit=4
  $region2: #{upsampling_forward.1} parent=0 // loop_pre_header
    _
  $region3: #{upsampling_forward.1} parent=0 // loop_header
    %s10 = sphi 0, %s14
    %p11 = scmp.ge.s32.totalorder %s10, 4
    %s20 = sphi 0, %s22
    %s23 = sphi 0, %s20
    %s24 = sphi 0, %s23
    %s40 = sphi 0, %s24
    %s44 = sphi 0, %s44
    %s46 = sphi 0, %s44
    %s47 = sphi 0, %s46
    %s61 = sphi 0, %s47
    %s65 = sphi 0, %s65
    %s67 = sphi 0, %s65
    %s68 = sphi 0, %s67
    %s82 = sphi 0, %s68
    %s86 = sphi 0, %s86
    %s88 = sphi 0, %s86
    %s89 = sphi 0, %s88
    %s103 = sphi 0, %s89
    %s109 = sphi 0, %s111
    %s112 = sphi 0, %s109
    %s113 = sphi 0, %s112
    %s129 = sphi 0, %s113
  $region4: #{upsampling_forward.1} parent=0 // loop_header_branch
    %13 = sbr.rel (%p11) target = $region8
  $region5: #{upsampling_forward.1} parent=0 // loop_body
    %s15 = ssub.s32 %s10, 1
    %s16 = ssub.s32 %s10, 2
    %s17 = sadd.s32 %s10, 1
    %s18 = ssub.s32 %s10, %s17
    %p19 = scmp.eq.s32.totalorder %s18, 0
    %s21 = sadd.s32 %s20, 1
    %s22 = scalar_select %p19, %s20, %s21
    %p25 = pneg %p19
    %p26 = scmp.eq.s32.totalorder %s10, 1
    %p27 = por %p25, %p26
    %p28 = scmp.ne.s32.totalorder %s20, %s23
    %p29 = scmp.eq.s32.totalorder %s10, 0
    %p30 = por %p28, %p29
    %p31 = scmp.ne.s32.totalorder %s20, %s23
    %p32 = scmp.eq.s32.totalorder %s15, 1
    %p33 = por %p31, %p32
    %p34 = scmp.ne.s32.totalorder %s23, %s24
    %p35 = scmp.eq.s32.totalorder %s15, 0
    %p36 = por %p34, %p35
    %p37 = scmp.ne.s32.totalorder %s23, %s24
    %p38 = scmp.eq.s32.totalorder %s16, 1
    %p39 = por %p37, %p38
    %p41 = scmp.ne.s32.totalorder %s24, %s40
    %p42 = scmp.eq.s32.totalorder %s16, 0
    %p43 = por %p41, %p42
    %s45 = sadd.s32 %s44, 1
    %p48 = scmp.eq.s32.totalorder %s10, 1
    %p49 = scmp.ne.s32.totalorder %s44, %s46
    %p50 = scmp.eq.s32.totalorder %s10, 0
    %p51 = por %p49, %p50
    %p52 = scmp.ne.s32.totalorder %s44, %s46
    %p53 = scmp.eq.s32.totalorder %s15, 1
    %p54 = por %p52, %p53
    %p55 = scmp.ne.s32.totalorder %s46, %s47
    %p56 = scmp.eq.s32.totalorder %s15, 0
    %p57 = por %p55, %p56
    %p58 = scmp.ne.s32.totalorder %s46, %s47
    %p59 = scmp.eq.s32.totalorder %s16, 1
    %p60 = por %p58, %p59
    %p62 = scmp.ne.s32.totalorder %s47, %s61
    %p63 = scmp.eq.s32.totalorder %s16, 0
    %p64 = por %p62, %p63
    %s66 = sadd.s32 %s65, 1
    %p69 = scmp.eq.s32.totalorder %s10, 1
    %p70 = scmp.ne.s32.totalorder %s65, %s67
    %p71 = scmp.eq.s32.totalorder %s10, 0
    %p72 = por %p70, %p71
    %p73 = scmp.ne.s32.totalorder %s65, %s67
    %p74 = scmp.eq.s32.totalorder %s15, 1
    %p75 = por %p73, %p74
    %p76 = scmp.ne.s32.totalorder %s67, %s68
    %p77 = scmp.eq.s32.totalorder %s15, 0
    %p78 = por %p76, %p77
    %p79 = scmp.ne.s32.totalorder %s67, %s68
    %p80 = scmp.eq.s32.totalorder %s16, 1
    %p81 = por %p79, %p80
    %p83 = scmp.ne.s32.totalorder %s68, %s82
    %p84 = scmp.eq.s32.totalorder %s16, 0
    %p85 = por %p83, %p84
    %s87 = sadd.s32 %s86, 1
    %p90 = scmp.eq.s32.totalorder %s10, 1
    %p91 = scmp.ne.s32.totalorder %s86, %s88
    %p92 = scmp.eq.s32.totalorder %s10, 0
    %p93 = por %p91, %p92
    %p94 = scmp.ne.s32.totalorder %s86, %s88
    %p95 = scmp.eq.s32.totalorder %s15, 1
    %p96 = por %p94, %p95
    %p97 = scmp.ne.s32.totalorder %s88, %s89
    %p98 = scmp.eq.s32.totalorder %s15, 0
    %p99 = por %p97, %p98
    %p100 = scmp.ne.s32.totalorder %s88, %s89
    %p101 = scmp.eq.s32.totalorder %s16, 1
    %p102 = por %p100, %p101
    %p104 = scmp.ne.s32.totalorder %s89, %s103
    %p105 = scmp.eq.s32.totalorder %s16, 0
    %p106 = por %p104, %p105
    %s107 = ssub.s32 %s10, %s17
    %p108 = scmp.eq.s32.totalorder %s107, 0
    %s110 = sadd.s32 %s109, 1
    %s111 = scalar_select %p108, %s109, %s110
    %p114 = pneg %p108
    %p115 = scmp.eq.s32.totalorder %s10, 1
    %p116 = por %p114, %p115
    %p117 = scmp.ne.s32.totalorder %s109, %s112
    %p118 = scmp.eq.s32.totalorder %s10, 0
    %p119 = por %p117, %p118
    %p120 = scmp.ne.s32.totalorder %s109, %s112
    %p121 = scmp.eq.s32.totalorder %s15, 1
    %p122 = por %p120, %p121
    %p123 = scmp.ne.s32.totalorder %s112, %s113
    %p124 = scmp.eq.s32.totalorder %s15, 0
    %p125 = por %p123, %p124
    %p126 = scmp.ne.s32.totalorder %s112, %s113
    %p127 = scmp.eq.s32.totalorder %s16, 1
    %p128 = por %p126, %p127
    %p130 = scmp.ne.s32.totalorder %s113, %s129
    %p131 = scmp.eq.s32.totalorder %s16, 0
    %p132 = por %p130, %p131
    %p133 = scmp.le.s32.totalorder 1, %s10
    %p134 = scmp.lt.s32.totalorder %s10, 3
    %p135 = pnand %p133, %p134
    %p136 = pneg %p135
    // Predicated region
    $region9: #{upsampling_forward.1} parent=5 // pred_check
      _
    $region10: #{upsampling_forward.1} parent=5 // pred_check_branch
      %138 = sbr.rel (%p135) target = $region12
    $region11: #{upsampling_forward.1} parent=5 // pred_region
      %s139 = ssub.s32 %s10, 1
      // Predicated region
      $region13: #{upsampling_forward.1} parent=11 // pred_check
        %p140 = pneg %p57
      $region14: #{upsampling_forward.1} parent=11 // pred_check_branch
        %142 = sbr.rel (%p140) target = $region16
      $region15: #{upsampling_forward.1} parent=11 // pred_region
        _
      $region16: #{upsampling_forward.1} parent=11 // pred_fallthru
        _
      // Predicated region
      $region17: #{upsampling_forward.1} parent=11 // pred_check
        %p143 = pneg %p78
      $region18: #{upsampling_forward.1} parent=11 // pred_check_branch
        %145 = sbr.rel (%p143) target = $region20
      $region19: #{upsampling_forward.1} parent=11 // pred_region
        _
      $region20: #{upsampling_forward.1} parent=11 // pred_fallthru
        _
      // Predicated region
      $region21: #{upsampling_forward.1} parent=11 // pred_check
        %p146 = pneg %p99
      $region22: #{upsampling_forward.1} parent=11 // pred_check_branch
        %148 = sbr.rel (%p146) target = $region24
      $region23: #{upsampling_forward.1} parent=11 // pred_region
        _
      $region24: #{upsampling_forward.1} parent=11 // pred_fallthru
        _
    $region12: #{upsampling_forward.1} parent=5 // pred_fallthru
      _
    %p149 = scmp.lt.s32.totalorder %s10, 2
    // Predicated region
    $region25: #{upsampling_forward.1} parent=5 // pred_check
      %p150 = pneg %p149
    $region26: #{upsampling_forward.1} parent=5 // pred_check_branch
      %152 = sbr.rel (%p150) target = $region28
    $region27: #{upsampling_forward.1} parent=5 // pred_region
      // Predicated region
      $region29: #{upsampling_forward.1} parent=27 // pred_check
        %p153 = pneg %p30
      $region30: #{upsampling_forward.1} parent=27 // pred_check_branch
        %155 = sbr.rel (%p153) target = $region32
      $region31: #{upsampling_forward.1} parent=27 // pred_region
        %s156 = smul.u32 128, %s10
        %p157 = scmp.lt.s32.totalorder %s156, 255
        %s158 = scalar_select %p157, %s156, 255
        %s159 = smul.addr %s158, 8
        %s160 = scalar_lea.vmem %s0, %s159
        %s161 = smul.u32 128, %s10
      $region32: #{upsampling_forward.1} parent=27 // pred_fallthru
        _
    $region28: #{upsampling_forward.1} parent=5 // pred_fallthru
      _
    %p162 = scmp.le.s32.totalorder 1, %s10
    %p163 = scmp.lt.s32.totalorder %s10, 3
    %p164 = pnand %p162, %p163
    %p165 = pneg %p164
    // Predicated region
    $region33: #{upsampling_forward.1} parent=5 // pred_check
      _
    $region34: #{upsampling_forward.1} parent=5 // pred_check_branch
      %167 = sbr.rel (%p164) target = $region36
    $region35: #{upsampling_forward.1} parent=5 // pred_region
      %s168 = ssub.s32 %s10, 1
      %s169 = smul.u32 128, %s15
      %p170 = scmp.lt.s32.totalorder %s169, 255
      %s171 = scalar_select %p170, %s169, 255
      %s172 = smul.addr %s171, 8
      %s173 = scalar_lea.vmem %s0, %s172
      %p174 = pneg %p36
      %p175 = pneg %p33
      %p176 = pneg %p57
      %p177 = pneg %p54
      %p178 = pneg %p78
      %p179 = pneg %p75
      %p180 = pneg %p99
      %p181 = pneg %p96
      %p182 = pneg %p125
      %p183 = pneg %p122
      %s184 = smul.u32 32, %s15
      %p185 = scmp.lt.s32.totalorder %s184, 63
      %s186 = scalar_select %p185, %s184, 63
      %s187 = smul.addr %s186, 8
      %s188 = smul.addr %s187, 8
      %s189 = scalar_lea.vmem %s4, %s188
      %s190 = smul.u32 128, %s15
      %p191 = scmp.lt.s32.totalorder %s190, 255
      %s192 = scalar_select %p191, %s190, 255
      %s193 = smul.addr %s192, 8
      %s194 = scalar_lea.vmem %s0, %s193
      %s195 = smul.u32 128, %s15
      %s196 = smul.u32 32, %s15
      %p197 = scmp.lt.s32.totalorder %s196, 63
      %s198 = scalar_select %p197, %s196, 63
      %s199 = smul.addr %s198, 8
      %s200 = smul.addr %s199, 8
      %s201 = scalar_lea.vmem %s4, %s200
      %s202 = smul.u32 32, %s15
      %v203 = vld [vmem:[%s194] sm:$0xff]
      %v204 = vld [vmem:[%s194 + $0x8] sm:$0xff]
      %v205 = vld [vmem:[%s194 + $0x10] sm:$0xff]
      %v206 = vld [vmem:[%s194 + $0x18] sm:$0xff]
      %v207 = vld [vmem:[%s194 + $0x20] sm:$0xff]
      %v208 = vld [vmem:[%s194 + $0x28] sm:$0xff]
      %v209 = vld [vmem:[%s194 + $0x30] sm:$0xff]
      %v210 = vld [vmem:[%s194 + $0x38] sm:$0xff]
      %v211 = vld [vmem:[%s194 + $0x40] sm:$0xff]
      %v212 = vld [vmem:[%s194 + $0x48] sm:$0xff]
      %v213 = vld [vmem:[%s194 + $0x50] sm:$0xff]
      %v214 = vld [vmem:[%s194 + $0x58] sm:$0xff]
      %v215 = vld [vmem:[%s194 + $0x60] sm:$0xff]
      %v216 = vld [vmem:[%s194 + $0x68] sm:$0xff]
      %v217 = vld [vmem:[%s194 + $0x70] sm:$0xff]
      %v218 = vld [vmem:[%s194 + $0x78] sm:$0xff]
      %v219 = vld [vmem:[%s194 + $0x80] sm:$0xff]
      %v220 = vld [vmem:[%s194 + $0x88] sm:$0xff]
      %v221 = vld [vmem:[%s194 + $0x90] sm:$0xff]
      %v222 = vld [vmem:[%s194 + $0x98] sm:$0xff]
      %v223 = vld [vmem:[%s194 + $0xa0] sm:$0xff]
      %v224 = vld [vmem:[%s194 + $0xa8] sm:$0xff]
      %v225 = vld [vmem:[%s194 + $0xb0] sm:$0xff]
      %v226 = vld [vmem:[%s194 + $0xb8] sm:$0xff]
      %v227 = vld [vmem:[%s194 + $0xc0] sm:$0xff]
      %v228 = vld [vmem:[%s194 + $0xc8] sm:$0xff]
      %v229 = vld [vmem:[%s194 + $0xd0] sm:$0xff]
      %v230 = vld [vmem:[%s194 + $0xd8] sm:$0xff]
      %v231 = vld [vmem:[%s194 + $0xe0] sm:$0xff]
      %v232 = vld [vmem:[%s194 + $0xe8] sm:$0xff]
      %v233 = vld [vmem:[%s194 + $0xf0] sm:$0xff]
      %v234 = vld [vmem:[%s194 + $0xf8] sm:$0xff]
      %v235 = vld [vmem:[%s194 + $0x100] sm:$0xff]
      %v236 = vld [vmem:[%s194 + $0x108] sm:$0xff]
      %v237 = vld [vmem:[%s194 + $0x110] sm:$0xff]
      %v238 = vld [vmem:[%s194 + $0x118] sm:$0xff]
      %v239 = vld [vmem:[%s194 + $0x120] sm:$0xff]
      %v240 = vld [vmem:[%s194 + $0x128] sm:$0xff]
      %v241 = vld [vmem:[%s194 + $0x130] sm:$0xff]
      %v242 = vld [vmem:[%s194 + $0x138] sm:$0xff]
      %v243 = vld [vmem:[%s194 + $0x140] sm:$0xff]
      %v244 = vld [vmem:[%s194 + $0x148] sm:$0xff]
      %v245 = vld [vmem:[%s194 + $0x150] sm:$0xff]
      %v246 = vld [vmem:[%s194 + $0x158] sm:$0xff]
      %v247 = vld [vmem:[%s194 + $0x160] sm:$0xff]
      %v248 = vld [vmem:[%s194 + $0x168] sm:$0xff]
      %v249 = vld [vmem:[%s194 + $0x170] sm:$0xff]
      %v250 = vld [vmem:[%s194 + $0x178] sm:$0xff]
      %v251 = vld [vmem:[%s194 + $0x180] sm:$0xff]
      %v252 = vld [vmem:[%s194 + $0x188] sm:$0xff]
      %v253 = vld [vmem:[%s194 + $0x190] sm:$0xff]
      %v254 = vld [vmem:[%s194 + $0x198] sm:$0xff]
      %v255 = vld [vmem:[%s194 + $0x1a0] sm:$0xff]
      %v256 = vld [vmem:[%s194 + $0x1a8] sm:$0xff]
      %v257 = vld [vmem:[%s194 + $0x1b0] sm:$0xff]
      %v258 = vld [vmem:[%s194 + $0x1b8] sm:$0xff]
      %v259 = vld [vmem:[%s194 + $0x1c0] sm:$0xff]
      %v260 = vld [vmem:[%s194 + $0x1c8] sm:$0xff]
      %v261 = vld [vmem:[%s194 + $0x1d0] sm:$0xff]
      %v262 = vld [vmem:[%s194 + $0x1d8] sm:$0xff]
      %v263 = vld [vmem:[%s194 + $0x1e0] sm:$0xff]
      %v264 = vld [vmem:[%s194 + $0x1e8] sm:$0xff]
      %v265 = vld [vmem:[%s194 + $0x1f0] sm:$0xff]
      %v266 = vld [vmem:[%s194 + $0x1f8] sm:$0xff]
      %v267 = vld [vmem:[%s194 + $0x200] sm:$0xff]
      %v268 = vld [vmem:[%s194 + $0x208] sm:$0xff]
      %v269 = vld [vmem:[%s194 + $0x210] sm:$0xff]
      %v270 = vld [vmem:[%s194 + $0x218] sm:$0xff]
      %v271 = vld [vmem:[%s194 + $0x220] sm:$0xff]
      %v272 = vld [vmem:[%s194 + $0x228] sm:$0xff]
      %v273 = vld [vmem:[%s194 + $0x230] sm:$0xff]
      %v274 = vld [vmem:[%s194 + $0x238] sm:$0xff]
      %v275 = vld [vmem:[%s194 + $0x240] sm:$0xff]
      %v276 = vld [vmem:[%s194 + $0x248] sm:$0xff]
      %v277 = vld [vmem:[%s194 + $0x250] sm:$0xff]
      %v278 = vld [vmem:[%s194 + $0x258] sm:$0xff]
      %v279 = vld [vmem:[%s194 + $0x260] sm:$0xff]
      %v280 = vld [vmem:[%s194 + $0x268] sm:$0xff]
      %v281 = vld [vmem:[%s194 + $0x270] sm:$0xff]
      %v282 = vld [vmem:[%s194 + $0x278] sm:$0xff]
      %v283 = vld [vmem:[%s194 + $0x280] sm:$0xff]
      %v284 = vld [vmem:[%s194 + $0x288] sm:$0xff]
      %v285 = vld [vmem:[%s194 + $0x290] sm:$0xff]
      %v286 = vld [vmem:[%s194 + $0x298] sm:$0xff]
      %v287 = vld [vmem:[%s194 + $0x2a0] sm:$0xff]
      %v288 = vld [vmem:[%s194 + $0x2a8] sm:$0xff]
      %v289 = vld [vmem:[%s194 + $0x2b0] sm:$0xff]
      %v290 = vld [vmem:[%s194 + $0x2b8] sm:$0xff]
      %v291 = vld [vmem:[%s194 + $0x2c0] sm:$0xff]
      %v292 = vld [vmem:[%s194 + $0x2c8] sm:$0xff]
      %v293 = vld [vmem:[%s194 + $0x2d0] sm:$0xff]
      %v294 = vld [vmem:[%s194 + $0x2d8] sm:$0xff]
      %v295 = vld [vmem:[%s194 + $0x2e0] sm:$0xff]
      %v296 = vld [vmem:[%s194 + $0x2e8] sm:$0xff]
      %v297 = vld [vmem:[%s194 + $0x2f0] sm:$0xff]
      %v298 = vld [vmem:[%s194 + $0x2f8] sm:$0xff]
      %v299 = vld [vmem:[%s194 + $0x300] sm:$0xff]
      %v300 = vld [vmem:[%s194 + $0x308] sm:$0xff]
      %v301 = vld [vmem:[%s194 + $0x310] sm:$0xff]
      %v302 = vld [vmem:[%s194 + $0x318] sm:$0xff]
      %v303 = vld [vmem:[%s194 + $0x320] sm:$0xff]
      %v304 = vld [vmem:[%s194 + $0x328] sm:$0xff]
      %v305 = vld [vmem:[%s194 + $0x330] sm:$0xff]
      %v306 = vld [vmem:[%s194 + $0x338] sm:$0xff]
      %v307 = vld [vmem:[%s194 + $0x340] sm:$0xff]
      %v308 = vld [vmem:[%s194 + $0x348] sm:$0xff]
      %v309 = vld [vmem:[%s194 + $0x350] sm:$0xff]
      %v310 = vld [vmem:[%s194 + $0x358] sm:$0xff]
      %v311 = vld [vmem:[%s194 + $0x360] sm:$0xff]
      %v312 = vld [vmem:[%s194 + $0x368] sm:$0xff]
      %v313 = vld [vmem:[%s194 + $0x370] sm:$0xff]
      %v314 = vld [vmem:[%s194 + $0x378] sm:$0xff]
      %v315 = vld [vmem:[%s194 + $0x380] sm:$0xff]
      %v316 = vld [vmem:[%s194 + $0x388] sm:$0xff]
      %v317 = vld [vmem:[%s194 + $0x390] sm:$0xff]
      %v318 = vld [vmem:[%s194 + $0x398] sm:$0xff]
      %v319 = vld [vmem:[%s194 + $0x3a0] sm:$0xff]
      %v320 = vld [vmem:[%s194 + $0x3a8] sm:$0xff]
      %v321 = vld [vmem:[%s194 + $0x3b0] sm:$0xff]
      %v322 = vld [vmem:[%s194 + $0x3b8] sm:$0xff]
      %v323 = vld [vmem:[%s194 + $0x3c0] sm:$0xff]
      %v324 = vld [vmem:[%s194 + $0x3c8] sm:$0xff]
      %v325 = vld [vmem:[%s194 + $0x3d0] sm:$0xff]
      %v326 = vld [vmem:[%s194 + $0x3d8] sm:$0xff]
      %v327 = vld [vmem:[%s194 + $0x3e0] sm:$0xff]
      %v328 = vld [vmem:[%s194 + $0x3e8] sm:$0xff]
      %v329 = vld [vmem:[%s194 + $0x3f0] sm:$0xff]
      %v330 = vld [vmem:[%s194 + $0x3f8] sm:$0xff]
      %v331 = vld [vmem:[%s1] sm:$0xff]
      %v332 = vld [vmem:[%s3] sm:$0x1]
      %v334 = vlaneseq
      %v335 = vshrl.u32 %v334, 7
      %v336 = vsub.s32 0, %v335
      %v337 = vrot.slane %v332, %v336
      %vm339 = vcmask 64512
      %v341 = vsel %vm339, %v203, 0
      %v344 = vsel %vm339, %v204, 0
      %v347 = vsel %vm339, %v205, 0
      %v350 = vsel %vm339, %v206, 0
      %v353 = vsel %vm339, %v207, 0
      %v356 = vsel %vm339, %v208, 0
      %v359 = vsel %vm339, %v209, 0
      %v362 = vsel %vm339, %v210, 0
      %v365 = vsel %vm339, %v211, 0
      %v368 = vsel %vm339, %v212, 0
      %v371 = vsel %vm339, %v213, 0
      %v374 = vsel %vm339, %v214, 0
      %v377 = vsel %vm339, %v215, 0
      %v380 = vsel %vm339, %v216, 0
      %v383 = vsel %vm339, %v217, 0
      %v386 = vsel %vm339, %v218, 0
      %v389 = vsel %vm339, %v219, 0
      %v392 = vsel %vm339, %v220, 0
      %v395 = vsel %vm339, %v221, 0
      %v398 = vsel %vm339, %v222, 0
      %v401 = vsel %vm339, %v223, 0
      %v404 = vsel %vm339, %v224, 0
      %v407 = vsel %vm339, %v225, 0
      %v410 = vsel %vm339, %v226, 0
      %v413 = vsel %vm339, %v227, 0
      %v416 = vsel %vm339, %v228, 0
      %v419 = vsel %vm339, %v229, 0
      %v422 = vsel %vm339, %v230, 0
      %v425 = vsel %vm339, %v231, 0
      %v428 = vsel %vm339, %v232, 0
      %v431 = vsel %vm339, %v233, 0
      %v434 = vsel %vm339, %v234, 0
      %v437 = vsel %vm339, %v235, 0
      %v440 = vsel %vm339, %v236, 0
      %v443 = vsel %vm339, %v237, 0
      %v446 = vsel %vm339, %v238, 0
      %v449 = vsel %vm339, %v239, 0
      %v452 = vsel %vm339, %v240, 0
      %v455 = vsel %vm339, %v241, 0
      %v458 = vsel %vm339, %v242, 0
      %v461 = vsel %vm339, %v243, 0
      %v464 = vsel %vm339, %v244, 0
      %v467 = vsel %vm339, %v245, 0
      %v470 = vsel %vm339, %v246, 0
      %v473 = vsel %vm339, %v247, 0
      %v476 = vsel %vm339, %v248, 0
      %v479 = vsel %vm339, %v249, 0
      %v482 = vsel %vm339, %v250, 0
      %v485 = vsel %vm339, %v251, 0
      %v488 = vsel %vm339, %v252, 0
      %v491 = vsel %vm339, %v253, 0
      %v494 = vsel %vm339, %v254, 0
      %v497 = vsel %vm339, %v255, 0
      %v500 = vsel %vm339, %v256, 0
      %v503 = vsel %vm339, %v257, 0
      %v506 = vsel %vm339, %v258, 0
      %v509 = vsel %vm339, %v259, 0
      %v512 = vsel %vm339, %v260, 0
      %v515 = vsel %vm339, %v261, 0
      %v518 = vsel %vm339, %v262, 0
      %v521 = vsel %vm339, %v263, 0
      %v524 = vsel %vm339, %v264, 0
      %v527 = vsel %vm339, %v265, 0
      %v530 = vsel %vm339, %v266, 0
      %v533 = vsel %vm339, %v267, 0
      %v536 = vsel %vm339, %v268, 0
      %v539 = vsel %vm339, %v269, 0
      %v542 = vsel %vm339, %v270, 0
      %v545 = vsel %vm339, %v271, 0
      %v548 = vsel %vm339, %v272, 0
      %v551 = vsel %vm339, %v273, 0
      %v554 = vsel %vm339, %v274, 0
      %v557 = vsel %vm339, %v275, 0
      %v560 = vsel %vm339, %v276, 0
      %v563 = vsel %vm339, %v277, 0
      %v566 = vsel %vm339, %v278, 0
      %v569 = vsel %vm339, %v279, 0
      %v572 = vsel %vm339, %v280, 0
      %v575 = vsel %vm339, %v281, 0
      %v578 = vsel %vm339, %v282, 0
      %v581 = vsel %vm339, %v283, 0
      %v584 = vsel %vm339, %v284, 0
      %v587 = vsel %vm339, %v285, 0
      %v590 = vsel %vm339, %v286, 0
      %v593 = vsel %vm339, %v287, 0
      %v596 = vsel %vm339, %v288, 0
      %v599 = vsel %vm339, %v289, 0
      %v602 = vsel %vm339, %v290, 0
      %v605 = vsel %vm339, %v291, 0
      %v608 = vsel %vm339, %v292, 0
      %v611 = vsel %vm339, %v293, 0
      %v614 = vsel %vm339, %v294, 0
      %v617 = vsel %vm339, %v295, 0
      %v620 = vsel %vm339, %v296, 0
      %v623 = vsel %vm339, %v297, 0
      %v626 = vsel %vm339, %v298, 0
      %v629 = vsel %vm339, %v299, 0
      %v632 = vsel %vm339, %v300, 0
      %v635 = vsel %vm339, %v301, 0
      %v638 = vsel %vm339, %v302, 0
      %v641 = vsel %vm339, %v303, 0
      %v644 = vsel %vm339, %v304, 0
      %v647 = vsel %vm339, %v305, 0
      %v650 = vsel %vm339, %v306, 0
      %v653 = vsel %vm339, %v307, 0
      %v656 = vsel %vm339, %v308, 0
      %v659 = vsel %vm339, %v309, 0
      %v662 = vsel %vm339, %v310, 0
      %v665 = vsel %vm339, %v311, 0
      %v668 = vsel %vm339, %v312, 0
      %v671 = vsel %vm339, %v313, 0
      %v674 = vsel %vm339, %v314, 0
      %v677 = vsel %vm339, %v315, 0
      %v680 = vsel %vm339, %v316, 0
      %v683 = vsel %vm339, %v317, 0
      %v686 = vsel %vm339, %v318, 0
      %v689 = vsel %vm339, %v319, 0
      %v692 = vsel %vm339, %v320, 0
      %v695 = vsel %vm339, %v321, 0
      %v698 = vsel %vm339, %v322, 0
      %v701 = vsel %vm339, %v323, 0
      %v704 = vsel %vm339, %v324, 0
      %v707 = vsel %vm339, %v325, 0
      %v710 = vsel %vm339, %v326, 0
      %v713 = vsel %vm339, %v327, 0
      %v716 = vsel %vm339, %v328, 0
      %v719 = vsel %vm339, %v329, 0
      %v722 = vsel %vm339, %v330, 0
      %724 = vmatprep.subr.mxu0 0.0
      %725 = vmatpush1.msra.mxu0 %v331
      %726 = vmatprep.subr.mxu0 0.0
      %727 = vmatpush1.msra.mxu0 0.0
      %728 = vmatprep.subr.mxu0 0.0
      %729 = vmatpush1.msra.mxu0 0.0
      %730 = vmatprep.subr.mxu0 0.0
      %731 = vmatpush1.msra.mxu0 0.0
      %732 = vmatprep.subr.mxu0 0.0
      %733 = vmatpush1.msra.mxu0 0.0
      %734 = vmatprep.subr.mxu0 0.0
      %735 = vmatpush1.msra.mxu0 0.0
      %736 = vmatprep.subr.mxu0 0.0
      %737 = vmatpush1.msra.mxu0 0.0
      %738 = vmatprep.subr.mxu0 0.0
      %739 = vmatpush1.msra.mxu0 0.0
      %740 = vmatprep.subr.mxu0 0.0
      %741 = vmatpush1.msra.mxu0 0.0
      %742 = vmatprep.subr.mxu0 0.0
      %743 = vmatpush1.msra.mxu0 0.0
      %744 = vmatprep.subr.mxu0 0.0
      %745 = vmatpush1.msra.mxu0 0.0
      %746 = vmatprep.subr.mxu0 0.0
      %747 = vmatpush1.msra.mxu0 0.0
      %748 = vmatprep.subr.mxu0 0.0
      %749 = vmatpush1.msra.mxu0 0.0
      %750 = vmatprep.subr.mxu0 0.0
      %751 = vmatpush1.msra.mxu0 0.0
      %752 = vmatprep.subr.mxu0 0.0
      %753 = vmatpush1.msra.mxu0 0.0
      %754 = vmatprep.subr.mxu0 0.0
      %755 = vmatpush1.msra.mxu0 0.0
      %756 = vmatprep.subr.mxu0 0.0
      %757 = vmatpush1.msra.mxu0 0.0
      %758 = vmatprep.subr.mxu0 0.0
      %759 = vmatpush1.msra.mxu0 0.0
      %760 = vmatprep.subr.mxu0 0.0
      %761 = vmatpush1.msra.mxu0 0.0
      %762 = vmatprep.subr.mxu0 0.0
      %763 = vmatpush1.msra.mxu0 0.0
      %764 = vmatprep.subr.mxu0 0.0
      %765 = vmatpush1.msra.mxu0 0.0
      %766 = vmatprep.subr.mxu0 0.0
      %767 = vmatpush1.msra.mxu0 0.0
      %768 = vmatprep.subr.mxu0 0.0
      %769 = vmatpush1.msra.mxu0 0.0
      %770 = vmatprep.subr.mxu0 0.0
      %771 = vmatpush1.msra.mxu0 0.0
      %772 = vmatprep.subr.mxu0 0.0
      %773 = vmatpush1.msra.mxu0 0.0
      %774 = vmatprep.subr.mxu0 0.0
      %775 = vmatpush1.msra.mxu0 0.0
      %776 = vmatprep.subr.mxu0 0.0
      %777 = vmatpush1.msra.mxu0 0.0
      %778 = vmatprep.subr.mxu0 0.0
      %779 = vmatpush1.msra.mxu0 0.0
      %780 = vmatprep.subr.mxu0 0.0
      %781 = vmatpush1.msra.mxu0 0.0
      %782 = vmatprep.subr.mxu0 0.0
      %783 = vmatpush1.msra.mxu0 0.0
      %784 = vmatprep.subr.mxu0 0.0
      %785 = vmatpush1.msra.mxu0 0.0
      %786 = vmatprep.subr.mxu0 0.0
      %787 = vmatpush1.msra.mxu0 0.0
      %788 = vmatprep.mubr.f32.mxu0 0.0
      %789 = vmatmul.mubr.f32.gmra.mrb[0].mxu0 %v341
      %v790 = vpop.f32.mrb[0].mxu0
      %v791 = vadd.f32 %v337, %v790
      %v792 = vpop.f32.mrb[0].mxu0
      %793 = vmatprep.mubr.f32.mxu0 0.0
      %794 = vmatmul.mubr.f32.gmra.mrb[0].mxu0 %v344
      %v795 = vpop.f32.mrb[0].mxu0
      %v796 = vadd.f32 %v337, %v795
      %v797 = vpop.f32.mrb[0].mxu0
      %798 = vmatprep.mubr.f32.mxu0 0.0
      %799 = vmatmul.mubr.f32.gmra.mrb[0].mxu0 %v347
      %v800 = vpop.f32.mrb[0].mxu0
      %v801 = vadd.f32 %v337, %v800
      %v802 = vpop.f32.mrb[0].mxu0
      %803 = vmatprep.mubr.f32.mxu0 0.0
      %804 = vmatmul.mubr.f32.gmra.mrb[0].mxu0 %v350
      %v805 = vpop.f32.mrb[0].mxu0
      %v806 = vadd.f32 %v337, %v805
      %v807 = vpop.f32.mrb[0].mxu0
      %808 = vmatprep.mubr.f32.mxu0 0.0
      %809 = vmatmul.mubr.f32.gmra.mrb[0].mxu0 %v353
      %v810 = vpop.f32.mrb[0].mxu0
      %v811 = vadd.f32 %v337, %v810
      %v812 = vpop.f32.mrb[0].mxu0
      %813 = vmatprep.mubr.f32.mxu0 0.0
      %814 = vmatmul.mubr.f32.gmra.mrb[0].mxu0 %v356
      %v815 = vpop.f32.mrb[0].mxu0
      %v816 = vadd.f32 %v337, %v815
      %v817 = vpop.f32.mrb[0].mxu0
      %818 = vmatprep.mubr.f32.mxu0 0.0
      %819 = vmatmul.mubr.f32.gmra.mrb[0].mxu0 %v359
      %v820 = vpop.f32.mrb[0].mxu0
      %v821 = vadd.f32 %v337, %v820
      %v822 = vpop.f32.mrb[0].mxu0
      %823 = vmatprep.mubr.f32.mxu0 0.0
      %824 = vmatmul.mubr.f32.gmra.mrb[0].mxu0 %v362
      %v825 = vpop.f32.mrb[0].mxu0
      %v826 = vadd.f32 %v337, %v825
      %v827 = vpop.f32.mrb[0].mxu0
      %828 = vmatprep.mubr.f32.mxu0 0.0
      %829 = vmatmul.mubr.f32.gmra.mrb[0].mxu0 %v365
      %v830 = vpop.f32.mrb[0].mxu0
      %v831 = vadd.f32 %v337, %v830
      %v832 = vpop.f32.mrb[0].mxu0
      %833 = vmatprep.mubr.f32.mxu0 0.0
      %834 = vmatmul.mubr.f32.gmra.mrb[0].mxu0 %v368
      %v835 = vpop.f32.mrb[0].mxu0
      %v836 = vadd.f32 %v337, %v835
      %v837 = vpop.f32.mrb[0].mxu0
      %838 = vmatprep.mubr.f32.mxu0 0.0
      %839 = vmatmul.mubr.f32.gmra.mrb[0].mxu0 %v371
      %v840 = vpop.f32.mrb[0].mxu0
      %v841 = vadd.f32 %v337, %v840
      %v842 = vpop.f32.mrb[0].mxu0
      %843 = vmatprep.mubr.f32.mxu0 0.0
      %844 = vmatmul.mubr.f32.gmra.mrb[0].mxu0 %v374
      %v845 = vpop.f32.mrb[0].mxu0
      %v846 = vadd.f32 %v337, %v845
      %v847 = vpop.f32.mrb[0].mxu0
      %848 = vmatprep.mubr.f32.mxu0 0.0
      %849 = vmatmul.mubr.f32.gmra.mrb[0].mxu0 %v377
      %v850 = vpop.f32.mrb[0].mxu0
      %v851 = vadd.f32 %v337, %v850
      %v852 = vpop.f32.mrb[0].mxu0
      %853 = vmatprep.mubr.f32.mxu0 0.0
      %854 = vmatmul.mubr.f32.gmra.mrb[0].mxu0 %v380
      %v855 = vpop.f32.mrb[0].mxu0
      %v856 = vadd.f32 %v337, %v855
      %v857 = vpop.f32.mrb[0].mxu0
      %858 = vmatprep.mubr.f32.mxu0 0.0
      %859 = vmatmul.mubr.f32.gmra.mrb[0].mxu0 %v383
      %v860 = vpop.f32.mrb[0].mxu0
      %v861 = vadd.f32 %v337, %v860
      %v862 = vpop.f32.mrb[0].mxu0
      %863 = vmatprep.mubr.f32.mxu0 0.0
      %864 = vmatmul.mubr.f32.gmra.mrb[0].mxu0 %v386
      %v865 = vpop.f32.mrb[0].mxu0
      %v866 = vadd.f32 %v337, %v865
      %v867 = vpop.f32.mrb[0].mxu0
      %868 = vmatprep.mubr.f32.mxu0 0.0
      %869 = vmatmul.mubr.f32.gmra.mrb[0].mxu0 %v389
      %v870 = vpop.f32.mrb[0].mxu0
      %v871 = vadd.f32 %v337, %v870
      %v872 = vpop.f32.mrb[0].mxu0
      %873 = vmatprep.mubr.f32.mxu0 0.0
      %874 = vmatmul.mubr.f32.gmra.mrb[0].mxu0 %v392
      %v875 = vpop.f32.mrb[0].mxu0
      %v876 = vadd.f32 %v337, %v875
      %v877 = vpop.f32.mrb[0].mxu0
      %878 = vmatprep.mubr.f32.mxu0 0.0
      %879 = vmatmul.mubr.f32.gmra.mrb[0].mxu0 %v395
      %v880 = vpop.f32.mrb[0].mxu0
      %v881 = vadd.f32 %v337, %v880
      %v882 = vpop.f32.mrb[0].mxu0
      %883 = vmatprep.mubr.f32.mxu0 0.0
      %884 = vmatmul.mubr.f32.gmra.mrb[0].mxu0 %v398
      %v885 = vpop.f32.mrb[0].mxu0
      %v886 = vadd.f32 %v337, %v885
      %v887 = vpop.f32.mrb[0].mxu0
      %888 = vmatprep.mubr.f32.mxu0 0.0
      %889 = vmatmul.mubr.f32.gmra.mrb[0].mxu0 %v401
      %v890 = vpop.f32.mrb[0].mxu0
      %v891 = vadd.f32 %v337, %v890
      %v892 = vpop.f32.mrb[0].mxu0
      %893 = vmatprep.mubr.f32.mxu0 0.0
      %894 = vmatmul.mubr.f32.gmra.mrb[0].mxu0 %v404
      %v895 = vpop.f32.mrb[0].mxu0
      %v896 = vadd.f32 %v337, %v895
      %v897 = vpop.f32.mrb[0].mxu0
      %898 = vmatprep.mubr.f32.mxu0 0.0
      %899 = vmatmul.mubr.f32.gmra.mrb[0].mxu0 %v407
      %v900 = vpop.f32.mrb[0].mxu0
      %v901 = vadd.f32 %v337, %v900
      %v902 = vpop.f32.mrb[0].mxu0
      %903 = vmatprep.mubr.f32.mxu0 0.0
      %904 = vmatmul.mubr.f32.gmra.mrb[0].mxu0 %v410
      %v905 = vpop.f32.mrb[0].mxu0
      %v906 = vadd.f32 %v337, %v905
      %v907 = vpop.f32.mrb[0].mxu0
      %908 = vmatprep.mubr.f32.mxu0 0.0
      %909 = vmatmul.mubr.f32.gmra.mrb[0].mxu0 %v413
      %v910 = vpop.f32.mrb[0].mxu0
      %v911 = vadd.f32 %v337, %v910
      %v912 = vpop.f32.mrb[0].mxu0
      %913 = vmatprep.mubr.f32.mxu0 0.0
      %914 = vmatmul.mubr.f32.gmra.mrb[0].mxu0 %v416
      %v915 = vpop.f32.mrb[0].mxu0
      %v916 = vadd.f32 %v337, %v915
      %v917 = vpop.f32.mrb[0].mxu0
      %918 = vmatprep.mubr.f32.mxu0 0.0
      %919 = vmatmul.mubr.f32.gmra.mrb[0].mxu0 %v419
      %v920 = vpop.f32.mrb[0].mxu0
      %v921 = vadd.f32 %v337, %v920
      %v922 = vpop.f32.mrb[0].mxu0
      %923 = vmatprep.mubr.f32.mxu0 0.0
      %924 = vmatmul.mubr.f32.gmra.mrb[0].mxu0 %v422
      %v925 = vpop.f32.mrb[0].mxu0
      %v926 = vadd.f32 %v337, %v925
      %v927 = vpop.f32.mrb[0].mxu0
      %928 = vmatprep.mubr.f32.mxu0 0.0
      %929 = vmatmul.mubr.f32.gmra.mrb[0].mxu0 %v425
      %v930 = vpop.f32.mrb[0].mxu0
      %v931 = vadd.f32 %v337, %v930
      %v932 = vpop.f32.mrb[0].mxu0
      %933 = vmatprep.mubr.f32.mxu0 0.0
      %934 = vmatmul.mubr.f32.gmra.mrb[0].mxu0 %v428
      %v935 = vpop.f32.mrb[0].mxu0
      %v936 = vadd.f32 %v337, %v935
      %v937 = vpop.f32.mrb[0].mxu0
      %938 = vmatprep.mubr.f32.mxu0 0.0
      %939 = vmatmul.mubr.f32.gmra.mrb[0].mxu0 %v431
      %v940 = vpop.f32.mrb[0].mxu0
      %v941 = vadd.f32 %v337, %v940
      %v942 = vpop.f32.mrb[0].mxu0
      %943 = vmatprep.mubr.f32.mxu0 0.0
      %944 = vmatmul.mubr.f32.gmra.mrb[0].mxu0 %v434
      %v945 = vpop.f32.mrb[0].mxu0
      %v946 = vadd.f32 %v337, %v945
      %v947 = vpop.f32.mrb[0].mxu0
      %948 = vmatprep.mubr.f32.mxu0 0.0
      %949 = vmatmul.mubr.f32.gmra.mrb[0].mxu0 %v437
      %v950 = vpop.f32.mrb[0].mxu0
      %v951 = vadd.f32 %v337, %v950
      %v952 = vpop.f32.mrb[0].mxu0
      %953 = vmatprep.mubr.f32.mxu0 0.0
      %954 = vmatmul.mubr.f32.gmra.mrb[0].mxu0 %v440
      %v955 = vpop.f32.mrb[0].mxu0
      %v956 = vadd.f32 %v337, %v955
      %v957 = vpop.f32.mrb[0].mxu0
      %958 = vmatprep.mubr.f32.mxu0 0.0
      %959 = vmatmul.mubr.f32.gmra.mrb[0].mxu0 %v443
      %v960 = vpop.f32.mrb[0].mxu0
      %v961 = vadd.f32 %v337, %v960
      %v962 = vpop.f32.mrb[0].mxu0
      %963 = vmatprep.mubr.f32.mxu0 0.0
      %964 = vmatmul.mubr.f32.gmra.mrb[0].mxu0 %v446
      %v965 = vpop.f32.mrb[0].mxu0
      %v966 = vadd.f32 %v337, %v965
      %v967 = vpop.f32.mrb[0].mxu0
      %968 = vmatprep.mubr.f32.mxu0 0.0
      %969 = vmatmul.mubr.f32.gmra.mrb[0].mxu0 %v449
      %v970 = vpop.f32.mrb[0].mxu0
      %v971 = vadd.f32 %v337, %v970
      %v972 = vpop.f32.mrb[0].mxu0
      %973 = vmatprep.mubr.f32.mxu0 0.0
      %974 = vmatmul.mubr.f32.gmra.mrb[0].mxu0 %v452
      %v975 = vpop.f32.mrb[0].mxu0
      %v976 = vadd.f32 %v337, %v975
      %v977 = vpop.f32.mrb[0].mxu0
      %978 = vmatprep.mubr.f32.mxu0 0.0
      %979 = vmatmul.mubr.f32.gmra.mrb[0].mxu0 %v455
      %v980 = vpop.f32.mrb[0].mxu0
      %v981 = vadd.f32 %v337, %v980
      %v982 = vpop.f32.mrb[0].mxu0
      %983 = vmatprep.mubr.f32.mxu0 0.0
      %984 = vmatmul.mubr.f32.gmra.mrb[0].mxu0 %v458
      %v985 = vpop.f32.mrb[0].mxu0
      %v986 = vadd.f32 %v337, %v985
      %v987 = vpop.f32.mrb[0].mxu0
      %988 = vmatprep.mubr.f32.mxu0 0.0
      %989 = vmatmul.mubr.f32.gmra.mrb[0].mxu0 %v461
      %v990 = vpop.f32.mrb[0].mxu0
      %v991 = vadd.f32 %v337, %v990
      %v992 = vpop.f32.mrb[0].mxu0
      %993 = vmatprep.mubr.f32.mxu0 0.0
      %994 = vmatmul.mubr.f32.gmra.mrb[0].mxu0 %v464
      %v995 = vpop.f32.mrb[0].mxu0
      %v996 = vadd.f32 %v337, %v995
      %v997 = vpop.f32.mrb[0].mxu0
      %998 = vmatprep.mubr.f32.mxu0 0.0
      %999 = vmatmul.mubr.f32.gmra.mrb[0].mxu0 %v467
      %v1000 = vpop.f32.mrb[0].mxu0
      %v1001 = vadd.f32 %v337, %v1000
      %v1002 = vpop.f32.mrb[0].mxu0
      %1003 = vmatprep.mubr.f32.mxu0 0.0
      %1004 = vmatmul.mubr.f32.gmra.mrb[0].mxu0 %v470
      %v1005 = vpop.f32.mrb[0].mxu0
      %v1006 = vadd.f32 %v337, %v1005
      %v1007 = vpop.f32.mrb[0].mxu0
      %1008 = vmatprep.mubr.f32.mxu0 0.0
      %1009 = vmatmul.mubr.f32.gmra.mrb[0].mxu0 %v473
      %v1010 = vpop.f32.mrb[0].mxu0
      %v1011 = vadd.f32 %v337, %v1010
      %v1012 = vpop.f32.mrb[0].mxu0
      %1013 = vmatprep.mubr.f32.mxu0 0.0
      %1014 = vmatmul.mubr.f32.gmra.mrb[0].mxu0 %v476
      %v1015 = vpop.f32.mrb[0].mxu0
      %v1016 = vadd.f32 %v337, %v1015
      %v1017 = vpop.f32.mrb[0].mxu0
      %1018 = vmatprep.mubr.f32.mxu0 0.0
      %1019 = vmatmul.mubr.f32.gmra.mrb[0].mxu0 %v479
      %v1020 = vpop.f32.mrb[0].mxu0
      %v1021 = vadd.f32 %v337, %v1020
      %v1022 = vpop.f32.mrb[0].mxu0
      %1023 = vmatprep.mubr.f32.mxu0 0.0
      %1024 = vmatmul.mubr.f32.gmra.mrb[0].mxu0 %v482
      %v1025 = vpop.f32.mrb[0].mxu0
      %v1026 = vadd.f32 %v337, %v1025
      %v1027 = vpop.f32.mrb[0].mxu0
      %1028 = vmatprep.mubr.f32.mxu0 0.0
      %1029 = vmatmul.mubr.f32.gmra.mrb[0].mxu0 %v485
      %v1030 = vpop.f32.mrb[0].mxu0
      %v1031 = vadd.f32 %v337, %v1030
      %v1032 = vpop.f32.mrb[0].mxu0
      %1033 = vmatprep.mubr.f32.mxu0 0.0
      %1034 = vmatmul.mubr.f32.gmra.mrb[0].mxu0 %v488
      %v1035 = vpop.f32.mrb[0].mxu0
      %v1036 = vadd.f32 %v337, %v1035
      %v1037 = vpop.f32.mrb[0].mxu0
      %1038 = vmatprep.mubr.f32.mxu0 0.0
      %1039 = vmatmul.mubr.f32.gmra.mrb[0].mxu0 %v491
      %v1040 = vpop.f32.mrb[0].mxu0
      %v1041 = vadd.f32 %v337, %v1040
      %v1042 = vpop.f32.mrb[0].mxu0
      %1043 = vmatprep.mubr.f32.mxu0 0.0
      %1044 = vmatmul.mubr.f32.gmra.mrb[0].mxu0 %v494
      %v1045 = vpop.f32.mrb[0].mxu0
      %v1046 = vadd.f32 %v337, %v1045
      %v1047 = vpop.f32.mrb[0].mxu0
      %1048 = vmatprep.mubr.f32.mxu0 0.0
      %1049 = vmatmul.mubr.f32.gmra.mrb[0].mxu0 %v497
      %v1050 = vpop.f32.mrb[0].mxu0
      %v1051 = vadd.f32 %v337, %v1050
      %v1052 = vpop.f32.mrb[0].mxu0
      %1053 = vmatprep.mubr.f32.mxu0 0.0
      %1054 = vmatmul.mubr.f32.gmra.mrb[0].mxu0 %v500
      %v1055 = vpop.f32.mrb[0].mxu0
      %v1056 = vadd.f32 %v337, %v1055
      %v1057 = vpop.f32.mrb[0].mxu0
      %1058 = vmatprep.mubr.f32.mxu0 0.0
      %1059 = vmatmul.mubr.f32.gmra.mrb[0].mxu0 %v503
      %v1060 = vpop.f32.mrb[0].mxu0
      %v1061 = vadd.f32 %v337, %v1060
      %v1062 = vpop.f32.mrb[0].mxu0
      %1063 = vmatprep.mubr.f32.mxu0 0.0
      %1064 = vmatmul.mubr.f32.gmra.mrb[0].mxu0 %v506
      %v1065 = vpop.f32.mrb[0].mxu0
      %v1066 = vadd.f32 %v337, %v1065
      %v1067 = vpop.f32.mrb[0].mxu0
      %1068 = vmatprep.mubr.f32.mxu0 0.0
      %1069 = vmatmul.mubr.f32.gmra.mrb[0].mxu0 %v509
      %v1070 = vpop.f32.mrb[0].mxu0
      %v1071 = vadd.f32 %v337, %v1070
      %v1072 = vpop.f32.mrb[0].mxu0
      %1073 = vmatprep.mubr.f32.mxu0 0.0
      %1074 = vmatmul.mubr.f32.gmra.mrb[0].mxu0 %v512
      %v1075 = vpop.f32.mrb[0].mxu0
      %v1076 = vadd.f32 %v337, %v1075
      %v1077 = vpop.f32.mrb[0].mxu0
      %1078 = vmatprep.mubr.f32.mxu0 0.0
      %1079 = vmatmul.mubr.f32.gmra.mrb[0].mxu0 %v515
      %v1080 = vpop.f32.mrb[0].mxu0
      %v1081 = vadd.f32 %v337, %v1080
      %v1082 = vpop.f32.mrb[0].mxu0
      %1083 = vmatprep.mubr.f32.mxu0 0.0
      %1084 = vmatmul.mubr.f32.gmra.mrb[0].mxu0 %v518
      %v1085 = vpop.f32.mrb[0].mxu0
      %v1086 = vadd.f32 %v337, %v1085
      %v1087 = vpop.f32.mrb[0].mxu0
      %1088 = vmatprep.mubr.f32.mxu0 0.0
      %1089 = vmatmul.mubr.f32.gmra.mrb[0].mxu0 %v521
      %v1090 = vpop.f32.mrb[0].mxu0
      %v1091 = vadd.f32 %v337, %v1090
      %v1092 = vpop.f32.mrb[0].mxu0
      %1093 = vmatprep.mubr.f32.mxu0 0.0
      %1094 = vmatmul.mubr.f32.gmra.mrb[0].mxu0 %v524
      %v1095 = vpop.f32.mrb[0].mxu0
      %v1096 = vadd.f32 %v337, %v1095
      %v1097 = vpop.f32.mrb[0].mxu0
      %1098 = vmatprep.mubr.f32.mxu0 0.0
      %1099 = vmatmul.mubr.f32.gmra.mrb[0].mxu0 %v527
      %v1100 = vpop.f32.mrb[0].mxu0
      %v1101 = vadd.f32 %v337, %v1100
      %v1102 = vpop.f32.mrb[0].mxu0
      %1103 = vmatprep.mubr.f32.mxu0 0.0
      %1104 = vmatmul.mubr.f32.gmra.mrb[0].mxu0 %v530
      %v1105 = vpop.f32.mrb[0].mxu0
      %v1106 = vadd.f32 %v337, %v1105
      %v1107 = vpop.f32.mrb[0].mxu0
      %1108 = vmatprep.mubr.f32.mxu0 0.0
      %1109 = vmatmul.mubr.f32.gmra.mrb[0].mxu0 %v533
      %v1110 = vpop.f32.mrb[0].mxu0
      %v1111 = vadd.f32 %v337, %v1110
      %v1112 = vpop.f32.mrb[0].mxu0
      %1113 = vmatprep.mubr.f32.mxu0 0.0
      %1114 = vmatmul.mubr.f32.gmra.mrb[0].mxu0 %v536
      %v1115 = vpop.f32.mrb[0].mxu0
      %v1116 = vadd.f32 %v337, %v1115
      %v1117 = vpop.f32.mrb[0].mxu0
      %1118 = vmatprep.mubr.f32.mxu0 0.0
      %1119 = vmatmul.mubr.f32.gmra.mrb[0].mxu0 %v539
      %v1120 = vpop.f32.mrb[0].mxu0
      %v1121 = vadd.f32 %v337, %v1120
      %v1122 = vpop.f32.mrb[0].mxu0
      %1123 = vmatprep.mubr.f32.mxu0 0.0
      %1124 = vmatmul.mubr.f32.gmra.mrb[0].mxu0 %v542
      %v1125 = vpop.f32.mrb[0].mxu0
      %v1126 = vadd.f32 %v337, %v1125
      %v1127 = vpop.f32.mrb[0].mxu0
      %1128 = vmatprep.mubr.f32.mxu0 0.0
      %1129 = vmatmul.mubr.f32.gmra.mrb[0].mxu0 %v545
      %v1130 = vpop.f32.mrb[0].mxu0
      %v1131 = vadd.f32 %v337, %v1130
      %v1132 = vpop.f32.mrb[0].mxu0
      %1133 = vmatprep.mubr.f32.mxu0 0.0
      %1134 = vmatmul.mubr.f32.gmra.mrb[0].mxu0 %v548
      %v1135 = vpop.f32.mrb[0].mxu0
      %v1136 = vadd.f32 %v337, %v1135
      %v1137 = vpop.f32.mrb[0].mxu0
      %1138 = vmatprep.mubr.f32.mxu0 0.0
      %1139 = vmatmul.mubr.f32.gmra.mrb[0].mxu0 %v551
      %v1140 = vpop.f32.mrb[0].mxu0
      %v1141 = vadd.f32 %v337, %v1140
      %v1142 = vpop.f32.mrb[0].mxu0
      %1143 = vmatprep.mubr.f32.mxu0 0.0
      %1144 = vmatmul.mubr.f32.gmra.mrb[0].mxu0 %v554
      %v1145 = vpop.f32.mrb[0].mxu0
      %v1146 = vadd.f32 %v337, %v1145
      %v1147 = vpop.f32.mrb[0].mxu0
      %1148 = vmatprep.mubr.f32.mxu0 0.0
      %1149 = vmatmul.mubr.f32.gmra.mrb[0].mxu0 %v557
      %v1150 = vpop.f32.mrb[0].mxu0
      %v1151 = vadd.f32 %v337, %v1150
      %v1152 = vpop.f32.mrb[0].mxu0
      %1153 = vmatprep.mubr.f32.mxu0 0.0
      %1154 = vmatmul.mubr.f32.gmra.mrb[0].mxu0 %v560
      %v1155 = vpop.f32.mrb[0].mxu0
      %v1156 = vadd.f32 %v337, %v1155
      %v1157 = vpop.f32.mrb[0].mxu0
      %1158 = vmatprep.mubr.f32.mxu0 0.0
      %1159 = vmatmul.mubr.f32.gmra.mrb[0].mxu0 %v563
      %v1160 = vpop.f32.mrb[0].mxu0
      %v1161 = vadd.f32 %v337, %v1160
      %v1162 = vpop.f32.mrb[0].mxu0
      %1163 = vmatprep.mubr.f32.mxu0 0.0
      %1164 = vmatmul.mubr.f32.gmra.mrb[0].mxu0 %v566
      %v1165 = vpop.f32.mrb[0].mxu0
      %v1166 = vadd.f32 %v337, %v1165
      %v1167 = vpop.f32.mrb[0].mxu0
      %1168 = vmatprep.mubr.f32.mxu0 0.0
      %1169 = vmatmul.mubr.f32.gmra.mrb[0].mxu0 %v569
      %v1170 = vpop.f32.mrb[0].mxu0
      %v1171 = vadd.f32 %v337, %v1170
      %v1172 = vpop.f32.mrb[0].mxu0
      %1173 = vmatprep.mubr.f32.mxu0 0.0
      %1174 = vmatmul.mubr.f32.gmra.mrb[0].mxu0 %v572
      %v1175 = vpop.f32.mrb[0].mxu0
      %v1176 = vadd.f32 %v337, %v1175
      %v1177 = vpop.f32.mrb[0].mxu0
      %1178 = vmatprep.mubr.f32.mxu0 0.0
      %1179 = vmatmul.mubr.f32.gmra.mrb[0].mxu0 %v575
      %v1180 = vpop.f32.mrb[0].mxu0
      %v1181 = vadd.f32 %v337, %v1180
      %v1182 = vpop.f32.mrb[0].mxu0
      %1183 = vmatprep.mubr.f32.mxu0 0.0
      %1184 = vmatmul.mubr.f32.gmra.mrb[0].mxu0 %v578
      %v1185 = vpop.f32.mrb[0].mxu0
      %v1186 = vadd.f32 %v337, %v1185
      %v1187 = vpop.f32.mrb[0].mxu0
      %1188 = vmatprep.mubr.f32.mxu0 0.0
      %1189 = vmatmul.mubr.f32.gmra.mrb[0].mxu0 %v581
      %v1190 = vpop.f32.mrb[0].mxu0
      %v1191 = vadd.f32 %v337, %v1190
      %v1192 = vpop.f32.mrb[0].mxu0
      %1193 = vmatprep.mubr.f32.mxu0 0.0
      %1194 = vmatmul.mubr.f32.gmra.mrb[0].mxu0 %v584
      %v1195 = vpop.f32.mrb[0].mxu0
      %v1196 = vadd.f32 %v337, %v1195
      %v1197 = vpop.f32.mrb[0].mxu0
      %1198 = vmatprep.mubr.f32.mxu0 0.0
      %1199 = vmatmul.mubr.f32.gmra.mrb[0].mxu0 %v587
      %v1200 = vpop.f32.mrb[0].mxu0
      %v1201 = vadd.f32 %v337, %v1200
      %v1202 = vpop.f32.mrb[0].mxu0
      %1203 = vmatprep.mubr.f32.mxu0 0.0
      %1204 = vmatmul.mubr.f32.gmra.mrb[0].mxu0 %v590
      %v1205 = vpop.f32.mrb[0].mxu0
      %v1206 = vadd.f32 %v337, %v1205
      %v1207 = vpop.f32.mrb[0].mxu0
      %1208 = vmatprep.mubr.f32.mxu0 0.0
      %1209 = vmatmul.mubr.f32.gmra.mrb[0].mxu0 %v593
      %v1210 = vpop.f32.mrb[0].mxu0
      %v1211 = vadd.f32 %v337, %v1210
      %v1212 = vpop.f32.mrb[0].mxu0
      %1213 = vmatprep.mubr.f32.mxu0 0.0
      %1214 = vmatmul.mubr.f32.gmra.mrb[0].mxu0 %v596
      %v1215 = vpop.f32.mrb[0].mxu0
      %v1216 = vadd.f32 %v337, %v1215
      %v1217 = vpop.f32.mrb[0].mxu0
      %1218 = vmatprep.mubr.f32.mxu0 0.0
      %1219 = vmatmul.mubr.f32.gmra.mrb[0].mxu0 %v599
      %v1220 = vpop.f32.mrb[0].mxu0
      %v1221 = vadd.f32 %v337, %v1220
      %v1222 = vpop.f32.mrb[0].mxu0
      %1223 = vmatprep.mubr.f32.mxu0 0.0
      %1224 = vmatmul.mubr.f32.gmra.mrb[0].mxu0 %v602
      %v1225 = vpop.f32.mrb[0].mxu0
      %v1226 = vadd.f32 %v337, %v1225
      %v1227 = vpop.f32.mrb[0].mxu0
      %1228 = vmatprep.mubr.f32.mxu0 0.0
      %1229 = vmatmul.mubr.f32.gmra.mrb[0].mxu0 %v605
      %v1230 = vpop.f32.mrb[0].mxu0
      %v1231 = vadd.f32 %v337, %v1230
      %v1232 = vpop.f32.mrb[0].mxu0
      %1233 = vmatprep.mubr.f32.mxu0 0.0
      %1234 = vmatmul.mubr.f32.gmra.mrb[0].mxu0 %v608
      %v1235 = vpop.f32.mrb[0].mxu0
      %v1236 = vadd.f32 %v337, %v1235
      %v1237 = vpop.f32.mrb[0].mxu0
      %1238 = vmatprep.mubr.f32.mxu0 0.0
      %1239 = vmatmul.mubr.f32.gmra.mrb[0].mxu0 %v611
      %v1240 = vpop.f32.mrb[0].mxu0
      %v1241 = vadd.f32 %v337, %v1240
      %v1242 = vpop.f32.mrb[0].mxu0
      %1243 = vmatprep.mubr.f32.mxu0 0.0
      %1244 = vmatmul.mubr.f32.gmra.mrb[0].mxu0 %v614
      %v1245 = vpop.f32.mrb[0].mxu0
      %v1246 = vadd.f32 %v337, %v1245
      %v1247 = vpop.f32.mrb[0].mxu0
      %1248 = vmatprep.mubr.f32.mxu0 0.0
      %1249 = vmatmul.mubr.f32.gmra.mrb[0].mxu0 %v617
      %v1250 = vpop.f32.mrb[0].mxu0
      %v1251 = vadd.f32 %v337, %v1250
      %v1252 = vpop.f32.mrb[0].mxu0
      %1253 = vmatprep.mubr.f32.mxu0 0.0
      %1254 = vmatmul.mubr.f32.gmra.mrb[0].mxu0 %v620
      %v1255 = vpop.f32.mrb[0].mxu0
      %v1256 = vadd.f32 %v337, %v1255
      %v1257 = vpop.f32.mrb[0].mxu0
      %1258 = vmatprep.mubr.f32.mxu0 0.0
      %1259 = vmatmul.mubr.f32.gmra.mrb[0].mxu0 %v623
      %v1260 = vpop.f32.mrb[0].mxu0
      %v1261 = vadd.f32 %v337, %v1260
      %v1262 = vpop.f32.mrb[0].mxu0
      %1263 = vmatprep.mubr.f32.mxu0 0.0
      %1264 = vmatmul.mubr.f32.gmra.mrb[0].mxu0 %v626
      %v1265 = vpop.f32.mrb[0].mxu0
      %v1266 = vadd.f32 %v337, %v1265
      %v1267 = vpop.f32.mrb[0].mxu0
      %1268 = vmatprep.mubr.f32.mxu0 0.0
      %1269 = vmatmul.mubr.f32.gmra.mrb[0].mxu0 %v629
      %v1270 = vpop.f32.mrb[0].mxu0
      %v1271 = vadd.f32 %v337, %v1270
      %v1272 = vpop.f32.mrb[0].mxu0
      %1273 = vmatprep.mubr.f32.mxu0 0.0
      %1274 = vmatmul.mubr.f32.gmra.mrb[0].mxu0 %v632
      %v1275 = vpop.f32.mrb[0].mxu0
      %v1276 = vadd.f32 %v337, %v1275
      %v1277 = vpop.f32.mrb[0].mxu0
      %1278 = vmatprep.mubr.f32.mxu0 0.0
      %1279 = vmatmul.mubr.f32.gmra.mrb[0].mxu0 %v635
      %v1280 = vpop.f32.mrb[0].mxu0
      %v1281 = vadd.f32 %v337, %v1280
      %v1282 = vpop.f32.mrb[0].mxu0
      %1283 = vmatprep.mubr.f32.mxu0 0.0
      %1284 = vmatmul.mubr.f32.gmra.mrb[0].mxu0 %v638
      %v1285 = vpop.f32.mrb[0].mxu0
      %v1286 = vadd.f32 %v337, %v1285
      %v1287 = vpop.f32.mrb[0].mxu0
      %1288 = vmatprep.mubr.f32.mxu0 0.0
      %1289 = vmatmul.mubr.f32.gmra.mrb[0].mxu0 %v641
      %v1290 = vpop.f32.mrb[0].mxu0
      %v1291 = vadd.f32 %v337, %v1290
      %v1292 = vpop.f32.mrb[0].mxu0
      %1293 = vmatprep.mubr.f32.mxu0 0.0
      %1294 = vmatmul.mubr.f32.gmra.mrb[0].mxu0 %v644
      %v1295 = vpop.f32.mrb[0].mxu0
      %v1296 = vadd.f32 %v337, %v1295
      %v1297 = vpop.f32.mrb[0].mxu0
      %1298 = vmatprep.mubr.f32.mxu0 0.0
      %1299 = vmatmul.mubr.f32.gmra.mrb[0].mxu0 %v647
      %v1300 = vpop.f32.mrb[0].mxu0
      %v1301 = vadd.f32 %v337, %v1300
      %v1302 = vpop.f32.mrb[0].mxu0
      %1303 = vmatprep.mubr.f32.mxu0 0.0
      %1304 = vmatmul.mubr.f32.gmra.mrb[0].mxu0 %v650
      %v1305 = vpop.f32.mrb[0].mxu0
      %v1306 = vadd.f32 %v337, %v1305
      %v1307 = vpop.f32.mrb[0].mxu0
      %1308 = vmatprep.mubr.f32.mxu0 0.0
      %1309 = vmatmul.mubr.f32.gmra.mrb[0].mxu0 %v653
      %v1310 = vpop.f32.mrb[0].mxu0
      %v1311 = vadd.f32 %v337, %v1310
      %v1312 = vpop.f32.mrb[0].mxu0
      %1313 = vmatprep.mubr.f32.mxu0 0.0
      %1314 = vmatmul.mubr.f32.gmra.mrb[0].mxu0 %v656
      %v1315 = vpop.f32.mrb[0].mxu0
      %v1316 = vadd.f32 %v337, %v1315
      %v1317 = vpop.f32.mrb[0].mxu0
      %1318 = vmatprep.mubr.f32.mxu0 0.0
      %1319 = vmatmul.mubr.f32.gmra.mrb[0].mxu0 %v659
      %v1320 = vpop.f32.mrb[0].mxu0
      %v1321 = vadd.f32 %v337, %v1320
      %v1322 = vpop.f32.mrb[0].mxu0
      %1323 = vmatprep.mubr.f32.mxu0 0.0
      %1324 = vmatmul.mubr.f32.gmra.mrb[0].mxu0 %v662
      %v1325 = vpop.f32.mrb[0].mxu0
      %v1326 = vadd.f32 %v337, %v1325
      %v1327 = vpop.f32.mrb[0].mxu0
      %1328 = vmatprep.mubr.f32.mxu0 0.0
      %1329 = vmatmul.mubr.f32.gmra.mrb[0].mxu0 %v665
      %v1330 = vpop.f32.mrb[0].mxu0
      %v1331 = vadd.f32 %v337, %v1330
      %v1332 = vpop.f32.mrb[0].mxu0
      %1333 = vmatprep.mubr.f32.mxu0 0.0
      %1334 = vmatmul.mubr.f32.gmra.mrb[0].mxu0 %v668
      %v1335 = vpop.f32.mrb[0].mxu0
      %v1336 = vadd.f32 %v337, %v1335
      %v1337 = vpop.f32.mrb[0].mxu0
      %1338 = vmatprep.mubr.f32.mxu0 0.0
      %1339 = vmatmul.mubr.f32.gmra.mrb[0].mxu0 %v671
      %v1340 = vpop.f32.mrb[0].mxu0
      %v1341 = vadd.f32 %v337, %v1340
      %v1342 = vpop.f32.mrb[0].mxu0
      %1343 = vmatprep.mubr.f32.mxu0 0.0
      %1344 = vmatmul.mubr.f32.gmra.mrb[0].mxu0 %v674
      %v1345 = vpop.f32.mrb[0].mxu0
      %v1346 = vadd.f32 %v337, %v1345
      %v1347 = vpop.f32.mrb[0].mxu0
      %1348 = vmatprep.mubr.f32.mxu0 0.0
      %1349 = vmatmul.mubr.f32.gmra.mrb[0].mxu0 %v677
      %v1350 = vpop.f32.mrb[0].mxu0
      %v1351 = vadd.f32 %v337, %v1350
      %v1352 = vpop.f32.mrb[0].mxu0
      %1353 = vmatprep.mubr.f32.mxu0 0.0
      %1354 = vmatmul.mubr.f32.gmra.mrb[0].mxu0 %v680
      %v1355 = vpop.f32.mrb[0].mxu0
      %v1356 = vadd.f32 %v337, %v1355
      %v1357 = vpop.f32.mrb[0].mxu0
      %1358 = vmatprep.mubr.f32.mxu0 0.0
      %1359 = vmatmul.mubr.f32.gmra.mrb[0].mxu0 %v683
      %v1360 = vpop.f32.mrb[0].mxu0
      %v1361 = vadd.f32 %v337, %v1360
      %v1362 = vpop.f32.mrb[0].mxu0
      %1363 = vmatprep.mubr.f32.mxu0 0.0
      %1364 = vmatmul.mubr.f32.gmra.mrb[0].mxu0 %v686
      %v1365 = vpop.f32.mrb[0].mxu0
      %v1366 = vadd.f32 %v337, %v1365
      %v1367 = vpop.f32.mrb[0].mxu0
      %1368 = vmatprep.mubr.f32.mxu0 0.0
      %1369 = vmatmul.mubr.f32.gmra.mrb[0].mxu0 %v689
      %v1370 = vpop.f32.mrb[0].mxu0
      %v1371 = vadd.f32 %v337, %v1370
      %v1372 = vpop.f32.mrb[0].mxu0
      %1373 = vmatprep.mubr.f32.mxu0 0.0
      %1374 = vmatmul.mubr.f32.gmra.mrb[0].mxu0 %v692
      %v1375 = vpop.f32.mrb[0].mxu0
      %v1376 = vadd.f32 %v337, %v1375
      %v1377 = vpop.f32.mrb[0].mxu0
      %1378 = vmatprep.mubr.f32.mxu0 0.0
      %1379 = vmatmul.mubr.f32.gmra.mrb[0].mxu0 %v695
      %v1380 = vpop.f32.mrb[0].mxu0
      %v1381 = vadd.f32 %v337, %v1380
      %v1382 = vpop.f32.mrb[0].mxu0
      %1383 = vmatprep.mubr.f32.mxu0 0.0
      %1384 = vmatmul.mubr.f32.gmra.mrb[0].mxu0 %v698
      %v1385 = vpop.f32.mrb[0].mxu0
      %v1386 = vadd.f32 %v337, %v1385
      %v1387 = vpop.f32.mrb[0].mxu0
      %1388 = vmatprep.mubr.f32.mxu0 0.0
      %1389 = vmatmul.mubr.f32.gmra.mrb[0].mxu0 %v701
      %v1390 = vpop.f32.mrb[0].mxu0
      %v1391 = vadd.f32 %v337, %v1390
      %v1392 = vpop.f32.mrb[0].mxu0
      %1393 = vmatprep.mubr.f32.mxu0 0.0
      %1394 = vmatmul.mubr.f32.gmra.mrb[0].mxu0 %v704
      %v1395 = vpop.f32.mrb[0].mxu0
      %v1396 = vadd.f32 %v337, %v1395
      %v1397 = vpop.f32.mrb[0].mxu0
      %1398 = vmatprep.mubr.f32.mxu0 0.0
      %1399 = vmatmul.mubr.f32.gmra.mrb[0].mxu0 %v707
      %v1400 = vpop.f32.mrb[0].mxu0
      %v1401 = vadd.f32 %v337, %v1400
      %v1402 = vpop.f32.mrb[0].mxu0
      %1403 = vmatprep.mubr.f32.mxu0 0.0
      %1404 = vmatmul.mubr.f32.gmra.mrb[0].mxu0 %v710
      %v1405 = vpop.f32.mrb[0].mxu0
      %v1406 = vadd.f32 %v337, %v1405
      %v1407 = vpop.f32.mrb[0].mxu0
      %1408 = vmatprep.mubr.f32.mxu0 0.0
      %1409 = vmatmul.mubr.f32.gmra.mrb[0].mxu0 %v713
      %v1410 = vpop.f32.mrb[0].mxu0
      %v1411 = vadd.f32 %v337, %v1410
      %v1412 = vpop.f32.mrb[0].mxu0
      %1413 = vmatprep.mubr.f32.mxu0 0.0
      %1414 = vmatmul.mubr.f32.gmra.mrb[0].mxu0 %v716
      %v1415 = vpop.f32.mrb[0].mxu0
      %v1416 = vadd.f32 %v337, %v1415
      %v1417 = vpop.f32.mrb[0].mxu0
      %1418 = vmatprep.mubr.f32.mxu0 0.0
      %1419 = vmatmul.mubr.f32.gmra.mrb[0].mxu0 %v719
      %v1420 = vpop.f32.mrb[0].mxu0
      %v1421 = vadd.f32 %v337, %v1420
      %v1422 = vpop.f32.mrb[0].mxu0
      %1423 = vmatprep.mubr.f32.mxu0 0.0
      %1424 = vmatmul.mubr.f32.gmra.mrb[0].mxu0 %v722
      %v1425 = vpop.f32.mrb[0].mxu0
      %v1426 = vadd.f32 %v337, %v1425
      %v1427 = vpop.f32.mrb[0].mxu0
      %1428 = vdwg.mxu0
      %v1429 = vld [vmem:[%s2] sm:$0xff]
      %1430 = vmatprep.subr.mxu0 0.0
      %1431 = vmatpush1.msra.mxu0 %v1429
      %1432 = vmatprep.subr.mxu0 0.0
      %1433 = vmatpush1.msra.mxu0 0.0
      %1434 = vmatprep.subr.mxu0 0.0
      %1435 = vmatpush1.msra.mxu0 0.0
      %1436 = vmatprep.subr.mxu0 0.0
      %1437 = vmatpush1.msra.mxu0 0.0
      %1438 = vmatprep.subr.mxu0 0.0
      %1439 = vmatpush1.msra.mxu0 0.0
      %1440 = vmatprep.subr.mxu0 0.0
      %1441 = vmatpush1.msra.mxu0 0.0
      %1442 = vmatprep.subr.mxu0 0.0
      %1443 = vmatpush1.msra.mxu0 0.0
      %1444 = vmatprep.subr.mxu0 0.0
      %1445 = vmatpush1.msra.mxu0 0.0
      %1446 = vmatprep.subr.mxu0 0.0
      %1447 = vmatpush1.msra.mxu0 0.0
      %1448 = vmatprep.subr.mxu0 0.0
      %1449 = vmatpush1.msra.mxu0 0.0
      %1450 = vmatprep.subr.mxu0 0.0
      %1451 = vmatpush1.msra.mxu0 0.0
      %1452 = vmatprep.subr.mxu0 0.0
      %1453 = vmatpush1.msra.mxu0 0.0
      %1454 = vmatprep.subr.mxu0 0.0
      %1455 = vmatpush1.msra.mxu0 0.0
      %1456 = vmatprep.subr.mxu0 0.0
      %1457 = vmatpush1.msra.mxu0 0.0
      %1458 = vmatprep.subr.mxu0 0.0
      %1459 = vmatpush1.msra.mxu0 0.0
      %1460 = vmatprep.subr.mxu0 0.0
      %1461 = vmatpush1.msra.mxu0 0.0
      %1462 = vmatprep.subr.mxu0 0.0
      %1463 = vmatpush1.msra.mxu0 0.0
      %1464 = vmatprep.subr.mxu0 0.0
      %1465 = vmatpush1.msra.mxu0 0.0
      %1466 = vmatprep.subr.mxu0 0.0
      %1467 = vmatpush1.msra.mxu0 0.0
      %1468 = vmatprep.subr.mxu0 0.0
      %1469 = vmatpush1.msra.mxu0 0.0
      %1470 = vmatprep.subr.mxu0 0.0
      %1471 = vmatpush1.msra.mxu0 0.0
      %1472 = vmatprep.subr.mxu0 0.0
      %1473 = vmatpush1.msra.mxu0 0.0
      %1474 = vmatprep.subr.mxu0 0.0
      %1475 = vmatpush1.msra.mxu0 0.0
      %1476 = vmatprep.subr.mxu0 0.0
      %1477 = vmatpush1.msra.mxu0 0.0
      %1478 = vmatprep.subr.mxu0 0.0
      %1479 = vmatpush1.msra.mxu0 0.0
      %1480 = vmatprep.subr.mxu0 0.0
      %1481 = vmatpush1.msra.mxu0 0.0
      %1482 = vmatprep.subr.mxu0 0.0
      %1483 = vmatpush1.msra.mxu0 0.0
      %1484 = vmatprep.subr.mxu0 0.0
      %1485 = vmatpush1.msra.mxu0 0.0
      %1486 = vmatprep.subr.mxu0 0.0
      %1487 = vmatpush1.msra.mxu0 0.0
      %1488 = vmatprep.subr.mxu0 0.0
      %1489 = vmatpush1.msra.mxu0 0.0
      %1490 = vmatprep.subr.mxu0 0.0
      %1491 = vmatpush1.msra.mxu0 0.0
      %1492 = vmatprep.subr.mxu0 0.0
      %1493 = vmatpush1.msra.mxu0 0.0
      %1494 = vmatprep.mubr.f32.mxu0 0.0
      %1495 = vmatmul.mubr.f32.gmra.mrb[0].mxu0 %v341
      %v1496 = vpop.f32.mrb[0].mxu0
      %v1497 = vadd.f32 %v337, %v1496
      %v1498 = vpop.f32.mrb[0].mxu0
      %1499 = vmatprep.mubr.f32.mxu0 0.0
      %1500 = vmatmul.mubr.f32.gmra.mrb[0].mxu0 %v344
      %v1501 = vpop.f32.mrb[0].mxu0
      %v1502 = vadd.f32 %v337, %v1501
      %v1503 = vpop.f32.mrb[0].mxu0
      %1504 = vmatprep.mubr.f32.mxu0 0.0
      %1505 = vmatmul.mubr.f32.gmra.mrb[0].mxu0 %v347
      %v1506 = vpop.f32.mrb[0].mxu0
      %v1507 = vadd.f32 %v337, %v1506
      %v1508 = vpop.f32.mrb[0].mxu0
      %1509 = vmatprep.mubr.f32.mxu0 0.0
      %1510 = vmatmul.mubr.f32.gmra.mrb[0].mxu0 %v350
      %v1511 = vpop.f32.mrb[0].mxu0
      %v1512 = vadd.f32 %v337, %v1511
      %v1513 = vpop.f32.mrb[0].mxu0
      %1514 = vmatprep.mubr.f32.mxu0 0.0
      %1515 = vmatmul.mubr.f32.gmra.mrb[0].mxu0 %v353
      %v1516 = vpop.f32.mrb[0].mxu0
      %v1517 = vadd.f32 %v337, %v1516
      %v1518 = vpop.f32.mrb[0].mxu0
      %1519 = vmatprep.mubr.f32.mxu0 0.0
      %1520 = vmatmul.mubr.f32.gmra.mrb[0].mxu0 %v356
      %v1521 = vpop.f32.mrb[0].mxu0
      %v1522 = vadd.f32 %v337, %v1521
      %v1523 = vpop.f32.mrb[0].mxu0
      %1524 = vmatprep.mubr.f32.mxu0 0.0
      %1525 = vmatmul.mubr.f32.gmra.mrb[0].mxu0 %v359
      %v1526 = vpop.f32.mrb[0].mxu0
      %v1527 = vadd.f32 %v337, %v1526
      %v1528 = vpop.f32.mrb[0].mxu0
      %1529 = vmatprep.mubr.f32.mxu0 0.0
      %1530 = vmatmul.mubr.f32.gmra.mrb[0].mxu0 %v362
      %v1531 = vpop.f32.mrb[0].mxu0
      %v1532 = vadd.f32 %v337, %v1531
      %v1533 = vpop.f32.mrb[0].mxu0
      %1534 = vmatprep.mubr.f32.mxu0 0.0
      %1535 = vmatmul.mubr.f32.gmra.mrb[0].mxu0 %v365
      %v1536 = vpop.f32.mrb[0].mxu0
      %v1537 = vadd.f32 %v337, %v1536
      %v1538 = vpop.f32.mrb[0].mxu0
      %1539 = vmatprep.mubr.f32.mxu0 0.0
      %1540 = vmatmul.mubr.f32.gmra.mrb[0].mxu0 %v368
      %v1541 = vpop.f32.mrb[0].mxu0
      %v1542 = vadd.f32 %v337, %v1541
      %v1543 = vpop.f32.mrb[0].mxu0
      %1544 = vmatprep.mubr.f32.mxu0 0.0
      %1545 = vmatmul.mubr.f32.gmra.mrb[0].mxu0 %v371
      %v1546 = vpop.f32.mrb[0].mxu0
      %v1547 = vadd.f32 %v337, %v1546
      %v1548 = vpop.f32.mrb[0].mxu0
      %1549 = vmatprep.mubr.f32.mxu0 0.0
      %1550 = vmatmul.mubr.f32.gmra.mrb[0].mxu0 %v374
      %v1551 = vpop.f32.mrb[0].mxu0
      %v1552 = vadd.f32 %v337, %v1551
      %v1553 = vpop.f32.mrb[0].mxu0
      %1554 = vmatprep.mubr.f32.mxu0 0.0
      %1555 = vmatmul.mubr.f32.gmra.mrb[0].mxu0 %v377
      %v1556 = vpop.f32.mrb[0].mxu0
      %v1557 = vadd.f32 %v337, %v1556
      %v1558 = vpop.f32.mrb[0].mxu0
      %1559 = vmatprep.mubr.f32.mxu0 0.0
      %1560 = vmatmul.mubr.f32.gmra.mrb[0].mxu0 %v380
      %v1561 = vpop.f32.mrb[0].mxu0
      %v1562 = vadd.f32 %v337, %v1561
      %v1563 = vpop.f32.mrb[0].mxu0
      %1564 = vmatprep.mubr.f32.mxu0 0.0
      %1565 = vmatmul.mubr.f32.gmra.mrb[0].mxu0 %v383
      %v1566 = vpop.f32.mrb[0].mxu0
      %v1567 = vadd.f32 %v337, %v1566
      %v1568 = vpop.f32.mrb[0].mxu0
      %1569 = vmatprep.mubr.f32.mxu0 0.0
      %1570 = vmatmul.mubr.f32.gmra.mrb[0].mxu0 %v386
      %v1571 = vpop.f32.mrb[0].mxu0
      %v1572 = vadd.f32 %v337, %v1571
      %v1573 = vpop.f32.mrb[0].mxu0
      %1574 = vmatprep.mubr.f32.mxu0 0.0
      %1575 = vmatmul.mubr.f32.gmra.mrb[0].mxu0 %v389
      %v1576 = vpop.f32.mrb[0].mxu0
      %v1577 = vadd.f32 %v337, %v1576
      %v1578 = vpop.f32.mrb[0].mxu0
      %1579 = vmatprep.mubr.f32.mxu0 0.0
      %1580 = vmatmul.mubr.f32.gmra.mrb[0].mxu0 %v392
      %v1581 = vpop.f32.mrb[0].mxu0
      %v1582 = vadd.f32 %v337, %v1581
      %v1583 = vpop.f32.mrb[0].mxu0
      %1584 = vmatprep.mubr.f32.mxu0 0.0
      %1585 = vmatmul.mubr.f32.gmra.mrb[0].mxu0 %v395
      %v1586 = vpop.f32.mrb[0].mxu0
      %v1587 = vadd.f32 %v337, %v1586
      %v1588 = vpop.f32.mrb[0].mxu0
      %1589 = vmatprep.mubr.f32.mxu0 0.0
      %1590 = vmatmul.mubr.f32.gmra.mrb[0].mxu0 %v398
      %v1591 = vpop.f32.mrb[0].mxu0
      %v1592 = vadd.f32 %v337, %v1591
      %v1593 = vpop.f32.mrb[0].mxu0
      %1594 = vmatprep.mubr.f32.mxu0 0.0
      %1595 = vmatmul.mubr.f32.gmra.mrb[0].mxu0 %v401
      %v1596 = vpop.f32.mrb[0].mxu0
      %v1597 = vadd.f32 %v337, %v1596
      %v1598 = vpop.f32.mrb[0].mxu0
      %1599 = vmatprep.mubr.f32.mxu0 0.0
      %1600 = vmatmul.mubr.f32.gmra.mrb[0].mxu0 %v404
      %v1601 = vpop.f32.mrb[0].mxu0
      %v1602 = vadd.f32 %v337, %v1601
      %v1603 = vpop.f32.mrb[0].mxu0
      %1604 = vmatprep.mubr.f32.mxu0 0.0
      %1605 = vmatmul.mubr.f32.gmra.mrb[0].mxu0 %v407
      %v1606 = vpop.f32.mrb[0].mxu0
      %v1607 = vadd.f32 %v337, %v1606
      %v1608 = vpop.f32.mrb[0].mxu0
      %1609 = vmatprep.mubr.f32.mxu0 0.0
      %1610 = vmatmul.mubr.f32.gmra.mrb[0].mxu0 %v410
      %v1611 = vpop.f32.mrb[0].mxu0
      %v1612 = vadd.f32 %v337, %v1611
      %v1613 = vpop.f32.mrb[0].mxu0
      %1614 = vmatprep.mubr.f32.mxu0 0.0
      %1615 = vmatmul.mubr.f32.gmra.mrb[0].mxu0 %v413
      %v1616 = vpop.f32.mrb[0].mxu0
      %v1617 = vadd.f32 %v337, %v1616
      %v1618 = vpop.f32.mrb[0].mxu0
      %1619 = vmatprep.mubr.f32.mxu0 0.0
      %1620 = vmatmul.mubr.f32.gmra.mrb[0].mxu0 %v416
      %v1621 = vpop.f32.mrb[0].mxu0
      %v1622 = vadd.f32 %v337, %v1621
      %v1623 = vpop.f32.mrb[0].mxu0
      %1624 = vmatprep.mubr.f32.mxu0 0.0
      %1625 = vmatmul.mubr.f32.gmra.mrb[0].mxu0 %v419
      %v1626 = vpop.f32.mrb[0].mxu0
      %v1627 = vadd.f32 %v337, %v1626
      %v1628 = vpop.f32.mrb[0].mxu0
      %1629 = vmatprep.mubr.f32.mxu0 0.0
      %1630 = vmatmul.mubr.f32.gmra.mrb[0].mxu0 %v422
      %v1631 = vpop.f32.mrb[0].mxu0
      %v1632 = vadd.f32 %v337, %v1631
      %v1633 = vpop.f32.mrb[0].mxu0
      %1634 = vmatprep.mubr.f32.mxu0 0.0
      %1635 = vmatmul.mubr.f32.gmra.mrb[0].mxu0 %v425
      %v1636 = vpop.f32.mrb[0].mxu0
      %v1637 = vadd.f32 %v337, %v1636
      %v1638 = vpop.f32.mrb[0].mxu0
      %1639 = vmatprep.mubr.f32.mxu0 0.0
      %1640 = vmatmul.mubr.f32.gmra.mrb[0].mxu0 %v428
      %v1641 = vpop.f32.mrb[0].mxu0
      %v1642 = vadd.f32 %v337, %v1641
      %v1643 = vpop.f32.mrb[0].mxu0
      %1644 = vmatprep.mubr.f32.mxu0 0.0
      %1645 = vmatmul.mubr.f32.gmra.mrb[0].mxu0 %v431
      %v1646 = vpop.f32.mrb[0].mxu0
      %v1647 = vadd.f32 %v337, %v1646
      %v1648 = vpop.f32.mrb[0].mxu0
      %1649 = vmatprep.mubr.f32.mxu0 0.0
      %1650 = vmatmul.mubr.f32.gmra.mrb[0].mxu0 %v434
      %v1651 = vpop.f32.mrb[0].mxu0
      %v1652 = vadd.f32 %v337, %v1651
      %v1653 = vpop.f32.mrb[0].mxu0
      %1654 = vmatprep.mubr.f32.mxu0 0.0
      %1655 = vmatmul.mubr.f32.gmra.mrb[0].mxu0 %v437
      %v1656 = vpop.f32.mrb[0].mxu0
      %v1657 = vadd.f32 %v337, %v1656
      %v1658 = vpop.f32.mrb[0].mxu0
      %1659 = vmatprep.mubr.f32.mxu0 0.0
      %1660 = vmatmul.mubr.f32.gmra.mrb[0].mxu0 %v440
      %v1661 = vpop.f32.mrb[0].mxu0
      %v1662 = vadd.f32 %v337, %v1661
      %v1663 = vpop.f32.mrb[0].mxu0
      %1664 = vmatprep.mubr.f32.mxu0 0.0
      %1665 = vmatmul.mubr.f32.gmra.mrb[0].mxu0 %v443
      %v1666 = vpop.f32.mrb[0].mxu0
      %v1667 = vadd.f32 %v337, %v1666
      %v1668 = vpop.f32.mrb[0].mxu0
      %1669 = vmatprep.mubr.f32.mxu0 0.0
      %1670 = vmatmul.mubr.f32.gmra.mrb[0].mxu0 %v446
      %v1671 = vpop.f32.mrb[0].mxu0
      %v1672 = vadd.f32 %v337, %v1671
      %v1673 = vpop.f32.mrb[0].mxu0
      %1674 = vmatprep.mubr.f32.mxu0 0.0
      %1675 = vmatmul.mubr.f32.gmra.mrb[0].mxu0 %v449
      %v1676 = vpop.f32.mrb[0].mxu0
      %v1677 = vadd.f32 %v337, %v1676
      %v1678 = vpop.f32.mrb[0].mxu0
      %1679 = vmatprep.mubr.f32.mxu0 0.0
      %1680 = vmatmul.mubr.f32.gmra.mrb[0].mxu0 %v452
      %v1681 = vpop.f32.mrb[0].mxu0
      %v1682 = vadd.f32 %v337, %v1681
      %v1683 = vpop.f32.mrb[0].mxu0
      %1684 = vmatprep.mubr.f32.mxu0 0.0
      %1685 = vmatmul.mubr.f32.gmra.mrb[0].mxu0 %v455
      %v1686 = vpop.f32.mrb[0].mxu0
      %v1687 = vadd.f32 %v337, %v1686
      %v1688 = vpop.f32.mrb[0].mxu0
      %1689 = vmatprep.mubr.f32.mxu0 0.0
      %1690 = vmatmul.mubr.f32.gmra.mrb[0].mxu0 %v458
      %v1691 = vpop.f32.mrb[0].mxu0
      %v1692 = vadd.f32 %v337, %v1691
      %v1693 = vpop.f32.mrb[0].mxu0
      %1694 = vmatprep.mubr.f32.mxu0 0.0
      %1695 = vmatmul.mubr.f32.gmra.mrb[0].mxu0 %v461
      %v1696 = vpop.f32.mrb[0].mxu0
      %v1697 = vadd.f32 %v337, %v1696
      %v1698 = vpop.f32.mrb[0].mxu0
      %1699 = vmatprep.mubr.f32.mxu0 0.0
      %1700 = vmatmul.mubr.f32.gmra.mrb[0].mxu0 %v464
      %v1701 = vpop.f32.mrb[0].mxu0
      %v1702 = vadd.f32 %v337, %v1701
      %v1703 = vpop.f32.mrb[0].mxu0
      %1704 = vmatprep.mubr.f32.mxu0 0.0
      %1705 = vmatmul.mubr.f32.gmra.mrb[0].mxu0 %v467
      %v1706 = vpop.f32.mrb[0].mxu0
      %v1707 = vadd.f32 %v337, %v1706
      %v1708 = vpop.f32.mrb[0].mxu0
      %1709 = vmatprep.mubr.f32.mxu0 0.0
      %1710 = vmatmul.mubr.f32.gmra.mrb[0].mxu0 %v470
      %v1711 = vpop.f32.mrb[0].mxu0
      %v1712 = vadd.f32 %v337, %v1711
      %v1713 = vpop.f32.mrb[0].mxu0
      %1714 = vmatprep.mubr.f32.mxu0 0.0
      %1715 = vmatmul.mubr.f32.gmra.mrb[0].mxu0 %v473
      %v1716 = vpop.f32.mrb[0].mxu0
      %v1717 = vadd.f32 %v337, %v1716
      %v1718 = vpop.f32.mrb[0].mxu0
      %1719 = vmatprep.mubr.f32.mxu0 0.0
      %1720 = vmatmul.mubr.f32.gmra.mrb[0].mxu0 %v476
      %v1721 = vpop.f32.mrb[0].mxu0
      %v1722 = vadd.f32 %v337, %v1721
      %v1723 = vpop.f32.mrb[0].mxu0
      %1724 = vmatprep.mubr.f32.mxu0 0.0
      %1725 = vmatmul.mubr.f32.gmra.mrb[0].mxu0 %v479
      %v1726 = vpop.f32.mrb[0].mxu0
      %v1727 = vadd.f32 %v337, %v1726
      %v1728 = vpop.f32.mrb[0].mxu0
      %1729 = vmatprep.mubr.f32.mxu0 0.0
      %1730 = vmatmul.mubr.f32.gmra.mrb[0].mxu0 %v482
      %v1731 = vpop.f32.mrb[0].mxu0
      %v1732 = vadd.f32 %v337, %v1731
      %v1733 = vpop.f32.mrb[0].mxu0
      %1734 = vmatprep.mubr.f32.mxu0 0.0
      %1735 = vmatmul.mubr.f32.gmra.mrb[0].mxu0 %v485
      %v1736 = vpop.f32.mrb[0].mxu0
      %v1737 = vadd.f32 %v337, %v1736
      %v1738 = vpop.f32.mrb[0].mxu0
      %1739 = vmatprep.mubr.f32.mxu0 0.0
      %1740 = vmatmul.mubr.f32.gmra.mrb[0].mxu0 %v488
      %v1741 = vpop.f32.mrb[0].mxu0
      %v1742 = vadd.f32 %v337, %v1741
      %v1743 = vpop.f32.mrb[0].mxu0
      %1744 = vmatprep.mubr.f32.mxu0 0.0
      %1745 = vmatmul.mubr.f32.gmra.mrb[0].mxu0 %v491
      %v1746 = vpop.f32.mrb[0].mxu0
      %v1747 = vadd.f32 %v337, %v1746
      %v1748 = vpop.f32.mrb[0].mxu0
      %1749 = vmatprep.mubr.f32.mxu0 0.0
      %1750 = vmatmul.mubr.f32.gmra.mrb[0].mxu0 %v494
      %v1751 = vpop.f32.mrb[0].mxu0
      %v1752 = vadd.f32 %v337, %v1751
      %v1753 = vpop.f32.mrb[0].mxu0
      %1754 = vmatprep.mubr.f32.mxu0 0.0
      %1755 = vmatmul.mubr.f32.gmra.mrb[0].mxu0 %v497
      %v1756 = vpop.f32.mrb[0].mxu0
      %v1757 = vadd.f32 %v337, %v1756
      %v1758 = vpop.f32.mrb[0].mxu0
      %1759 = vmatprep.mubr.f32.mxu0 0.0
      %1760 = vmatmul.mubr.f32.gmra.mrb[0].mxu0 %v500
      %v1761 = vpop.f32.mrb[0].mxu0
      %v1762 = vadd.f32 %v337, %v1761
      %v1763 = vpop.f32.mrb[0].mxu0
      %1764 = vmatprep.mubr.f32.mxu0 0.0
      %1765 = vmatmul.mubr.f32.gmra.mrb[0].mxu0 %v503
      %v1766 = vpop.f32.mrb[0].mxu0
      %v1767 = vadd.f32 %v337, %v1766
      %v1768 = vpop.f32.mrb[0].mxu0
      %1769 = vmatprep.mubr.f32.mxu0 0.0
      %1770 = vmatmul.mubr.f32.gmra.mrb[0].mxu0 %v506
      %v1771 = vpop.f32.mrb[0].mxu0
      %v1772 = vadd.f32 %v337, %v1771
      %v1773 = vpop.f32.mrb[0].mxu0
      %1774 = vmatprep.mubr.f32.mxu0 0.0
      %1775 = vmatmul.mubr.f32.gmra.mrb[0].mxu0 %v509
      %v1776 = vpop.f32.mrb[0].mxu0
      %v1777 = vadd.f32 %v337, %v1776
      %v1778 = vpop.f32.mrb[0].mxu0
      %1779 = vmatprep.mubr.f32.mxu0 0.0
      %1780 = vmatmul.mubr.f32.gmra.mrb[0].mxu0 %v512
      %v1781 = vpop.f32.mrb[0].mxu0
      %v1782 = vadd.f32 %v337, %v1781
      %v1783 = vpop.f32.mrb[0].mxu0
      %1784 = vmatprep.mubr.f32.mxu0 0.0
      %1785 = vmatmul.mubr.f32.gmra.mrb[0].mxu0 %v515
      %v1786 = vpop.f32.mrb[0].mxu0
      %v1787 = vadd.f32 %v337, %v1786
      %v1788 = vpop.f32.mrb[0].mxu0
      %1789 = vmatprep.mubr.f32.mxu0 0.0
      %1790 = vmatmul.mubr.f32.gmra.mrb[0].mxu0 %v518
      %v1791 = vpop.f32.mrb[0].mxu0
      %v1792 = vadd.f32 %v337, %v1791
      %v1793 = vpop.f32.mrb[0].mxu0
      %1794 = vmatprep.mubr.f32.mxu0 0.0
      %1795 = vmatmul.mubr.f32.gmra.mrb[0].mxu0 %v521
      %v1796 = vpop.f32.mrb[0].mxu0
      %v1797 = vadd.f32 %v337, %v1796
      %v1798 = vpop.f32.mrb[0].mxu0
      %1799 = vmatprep.mubr.f32.mxu0 0.0
      %1800 = vmatmul.mubr.f32.gmra.mrb[0].mxu0 %v524
      %v1801 = vpop.f32.mrb[0].mxu0
      %v1802 = vadd.f32 %v337, %v1801
      %v1803 = vpop.f32.mrb[0].mxu0
      %1804 = vmatprep.mubr.f32.mxu0 0.0
      %1805 = vmatmul.mubr.f32.gmra.mrb[0].mxu0 %v527
      %v1806 = vpop.f32.mrb[0].mxu0
      %v1807 = vadd.f32 %v337, %v1806
      %v1808 = vpop.f32.mrb[0].mxu0
      %1809 = vmatprep.mubr.f32.mxu0 0.0
      %1810 = vmatmul.mubr.f32.gmra.mrb[0].mxu0 %v530
      %v1811 = vpop.f32.mrb[0].mxu0
      %v1812 = vadd.f32 %v337, %v1811
      %v1813 = vpop.f32.mrb[0].mxu0
      %1814 = vmatprep.mubr.f32.mxu0 0.0
      %1815 = vmatmul.mubr.f32.gmra.mrb[0].mxu0 %v533
      %v1816 = vpop.f32.mrb[0].mxu0
      %v1817 = vadd.f32 %v337, %v1816
      %v1818 = vpop.f32.mrb[0].mxu0
      %1819 = vmatprep.mubr.f32.mxu0 0.0
      %1820 = vmatmul.mubr.f32.gmra.mrb[0].mxu0 %v536
      %v1821 = vpop.f32.mrb[0].mxu0
      %v1822 = vadd.f32 %v337, %v1821
      %v1823 = vpop.f32.mrb[0].mxu0
      %1824 = vmatprep.mubr.f32.mxu0 0.0
      %1825 = vmatmul.mubr.f32.gmra.mrb[0].mxu0 %v539
      %v1826 = vpop.f32.mrb[0].mxu0
      %v1827 = vadd.f32 %v337, %v1826
      %v1828 = vpop.f32.mrb[0].mxu0
      %1829 = vmatprep.mubr.f32.mxu0 0.0
      %1830 = vmatmul.mubr.f32.gmra.mrb[0].mxu0 %v542
      %v1831 = vpop.f32.mrb[0].mxu0
      %v1832 = vadd.f32 %v337, %v1831
      %v1833 = vpop.f32.mrb[0].mxu0
      %1834 = vmatprep.mubr.f32.mxu0 0.0
      %1835 = vmatmul.mubr.f32.gmra.mrb[0].mxu0 %v545
      %v1836 = vpop.f32.mrb[0].mxu0
      %v1837 = vadd.f32 %v337, %v1836
      %v1838 = vpop.f32.mrb[0].mxu0
      %1839 = vmatprep.mubr.f32.mxu0 0.0
      %1840 = vmatmul.mubr.f32.gmra.mrb[0].mxu0 %v548
      %v1841 = vpop.f32.mrb[0].mxu0
      %v1842 = vadd.f32 %v337, %v1841
      %v1843 = vpop.f32.mrb[0].mxu0
      %1844 = vmatprep.mubr.f32.mxu0 0.0
      %1845 = vmatmul.mubr.f32.gmra.mrb[0].mxu0 %v551
      %v1846 = vpop.f32.mrb[0].mxu0
      %v1847 = vadd.f32 %v337, %v1846
      %v1848 = vpop.f32.mrb[0].mxu0
      %1849 = vmatprep.mubr.f32.mxu0 0.0
      %1850 = vmatmul.mubr.f32.gmra.mrb[0].mxu0 %v554
      %v1851 = vpop.f32.mrb[0].mxu0
      %v1852 = vadd.f32 %v337, %v1851
      %v1853 = vpop.f32.mrb[0].mxu0
      %1854 = vmatprep.mubr.f32.mxu0 0.0
      %1855 = vmatmul.mubr.f32.gmra.mrb[0].mxu0 %v557
      %v1856 = vpop.f32.mrb[0].mxu0
      %v1857 = vadd.f32 %v337, %v1856
      %v1858 = vpop.f32.mrb[0].mxu0
      %1859 = vmatprep.mubr.f32.mxu0 0.0
      %1860 = vmatmul.mubr.f32.gmra.mrb[0].mxu0 %v560
      %v1861 = vpop.f32.mrb[0].mxu0
      %v1862 = vadd.f32 %v337, %v1861
      %v1863 = vpop.f32.mrb[0].mxu0
      %1864 = vmatprep.mubr.f32.mxu0 0.0
      %1865 = vmatmul.mubr.f32.gmra.mrb[0].mxu0 %v563
      %v1866 = vpop.f32.mrb[0].mxu0
      %v1867 = vadd.f32 %v337, %v1866
      %v1868 = vpop.f32.mrb[0].mxu0
      %1869 = vmatprep.mubr.f32.mxu0 0.0
      %1870 = vmatmul.mubr.f32.gmra.mrb[0].mxu0 %v566
      %v1871 = vpop.f32.mrb[0].mxu0
      %v1872 = vadd.f32 %v337, %v1871
      %v1873 = vpop.f32.mrb[0].mxu0
      %1874 = vmatprep.mubr.f32.mxu0 0.0
      %1875 = vmatmul.mubr.f32.gmra.mrb[0].mxu0 %v569
      %v1876 = vpop.f32.mrb[0].mxu0
      %v1877 = vadd.f32 %v337, %v1876
      %v1878 = vpop.f32.mrb[0].mxu0
      %1879 = vmatprep.mubr.f32.mxu0 0.0
      %1880 = vmatmul.mubr.f32.gmra.mrb[0].mxu0 %v572
      %v1881 = vpop.f32.mrb[0].mxu0
      %v1882 = vadd.f32 %v337, %v1881
      %v1883 = vpop.f32.mrb[0].mxu0
      %1884 = vmatprep.mubr.f32.mxu0 0.0
      %1885 = vmatmul.mubr.f32.gmra.mrb[0].mxu0 %v575
      %v1886 = vpop.f32.mrb[0].mxu0
      %v1887 = vadd.f32 %v337, %v1886
      %v1888 = vpop.f32.mrb[0].mxu0
      %1889 = vmatprep.mubr.f32.mxu0 0.0
      %1890 = vmatmul.mubr.f32.gmra.mrb[0].mxu0 %v578
      %v1891 = vpop.f32.mrb[0].mxu0
      %v1892 = vadd.f32 %v337, %v1891
      %v1893 = vpop.f32.mrb[0].mxu0
      %1894 = vmatprep.mubr.f32.mxu0 0.0
      %1895 = vmatmul.mubr.f32.gmra.mrb[0].mxu0 %v581
      %v1896 = vpop.f32.mrb[0].mxu0
      %v1897 = vadd.f32 %v337, %v1896
      %v1898 = vpop.f32.mrb[0].mxu0
      %1899 = vmatprep.mubr.f32.mxu0 0.0
      %1900 = vmatmul.mubr.f32.gmra.mrb[0].mxu0 %v584
      %v1901 = vpop.f32.mrb[0].mxu0
      %v1902 = vadd.f32 %v337, %v1901
      %v1903 = vpop.f32.mrb[0].mxu0
      %1904 = vmatprep.mubr.f32.mxu0 0.0
      %1905 = vmatmul.mubr.f32.gmra.mrb[0].mxu0 %v587
      %v1906 = vpop.f32.mrb[0].mxu0
      %v1907 = vadd.f32 %v337, %v1906
      %v1908 = vpop.f32.mrb[0].mxu0
      %1909 = vmatprep.mubr.f32.mxu0 0.0
      %1910 = vmatmul.mubr.f32.gmra.mrb[0].mxu0 %v590
      %v1911 = vpop.f32.mrb[0].mxu0
      %v1912 = vadd.f32 %v337, %v1911
      %v1913 = vpop.f32.mrb[0].mxu0
      %1914 = vmatprep.mubr.f32.mxu0 0.0
      %1915 = vmatmul.mubr.f32.gmra.mrb[0].mxu0 %v593
      %v1916 = vpop.f32.mrb[0].mxu0
      %v1917 = vadd.f32 %v337, %v1916
      %v1918 = vpop.f32.mrb[0].mxu0
      %1919 = vmatprep.mubr.f32.mxu0 0.0
      %1920 = vmatmul.mubr.f32.gmra.mrb[0].mxu0 %v596
      %v1921 = vpop.f32.mrb[0].mxu0
      %v1922 = vadd.f32 %v337, %v1921
      %v1923 = vpop.f32.mrb[0].mxu0
      %1924 = vmatprep.mubr.f32.mxu0 0.0
      %1925 = vmatmul.mubr.f32.gmra.mrb[0].mxu0 %v599
      %v1926 = vpop.f32.mrb[0].mxu0
      %v1927 = vadd.f32 %v337, %v1926
      %v1928 = vpop.f32.mrb[0].mxu0
      %1929 = vmatprep.mubr.f32.mxu0 0.0
      %1930 = vmatmul.mubr.f32.gmra.mrb[0].mxu0 %v602
      %v1931 = vpop.f32.mrb[0].mxu0
      %v1932 = vadd.f32 %v337, %v1931
      %v1933 = vpop.f32.mrb[0].mxu0
      %1934 = vmatprep.mubr.f32.mxu0 0.0
      %1935 = vmatmul.mubr.f32.gmra.mrb[0].mxu0 %v605
      %v1936 = vpop.f32.mrb[0].mxu0
      %v1937 = vadd.f32 %v337, %v1936
      %v1938 = vpop.f32.mrb[0].mxu0
      %1939 = vmatprep.mubr.f32.mxu0 0.0
      %1940 = vmatmul.mubr.f32.gmra.mrb[0].mxu0 %v608
      %v1941 = vpop.f32.mrb[0].mxu0
      %v1942 = vadd.f32 %v337, %v1941
      %v1943 = vpop.f32.mrb[0].mxu0
      %1944 = vmatprep.mubr.f32.mxu0 0.0
      %1945 = vmatmul.mubr.f32.gmra.mrb[0].mxu0 %v611
      %v1946 = vpop.f32.mrb[0].mxu0
      %v1947 = vadd.f32 %v337, %v1946
      %v1948 = vpop.f32.mrb[0].mxu0
      %1949 = vmatprep.mubr.f32.mxu0 0.0
      %1950 = vmatmul.mubr.f32.gmra.mrb[0].mxu0 %v614
      %v1951 = vpop.f32.mrb[0].mxu0
      %v1952 = vadd.f32 %v337, %v1951
      %v1953 = vpop.f32.mrb[0].mxu0
      %1954 = vmatprep.mubr.f32.mxu0 0.0
      %1955 = vmatmul.mubr.f32.gmra.mrb[0].mxu0 %v617
      %v1956 = vpop.f32.mrb[0].mxu0
      %v1957 = vadd.f32 %v337, %v1956
      %v1958 = vpop.f32.mrb[0].mxu0
      %1959 = vmatprep.mubr.f32.mxu0 0.0
      %1960 = vmatmul.mubr.f32.gmra.mrb[0].mxu0 %v620
      %v1961 = vpop.f32.mrb[0].mxu0
      %v1962 = vadd.f32 %v337, %v1961
      %v1963 = vpop.f32.mrb[0].mxu0
      %1964 = vmatprep.mubr.f32.mxu0 0.0
      %1965 = vmatmul.mubr.f32.gmra.mrb[0].mxu0 %v623
      %v1966 = vpop.f32.mrb[0].mxu0
      %v1967 = vadd.f32 %v337, %v1966
      %v1968 = vpop.f32.mrb[0].mxu0
      %1969 = vmatprep.mubr.f32.mxu0 0.0
      %1970 = vmatmul.mubr.f32.gmra.mrb[0].mxu0 %v626
      %v1971 = vpop.f32.mrb[0].mxu0
      %v1972 = vadd.f32 %v337, %v1971
      %v1973 = vpop.f32.mrb[0].mxu0
      %1974 = vmatprep.mubr.f32.mxu0 0.0
      %1975 = vmatmul.mubr.f32.gmra.mrb[0].mxu0 %v629
      %v1976 = vpop.f32.mrb[0].mxu0
      %v1977 = vadd.f32 %v337, %v1976
      %v1978 = vpop.f32.mrb[0].mxu0
      %1979 = vmatprep.mubr.f32.mxu0 0.0
      %1980 = vmatmul.mubr.f32.gmra.mrb[0].mxu0 %v632
      %v1981 = vpop.f32.mrb[0].mxu0
      %v1982 = vadd.f32 %v337, %v1981
      %v1983 = vpop.f32.mrb[0].mxu0
      %1984 = vmatprep.mubr.f32.mxu0 0.0
      %1985 = vmatmul.mubr.f32.gmra.mrb[0].mxu0 %v635
      %v1986 = vpop.f32.mrb[0].mxu0
      %v1987 = vadd.f32 %v337, %v1986
      %v1988 = vpop.f32.mrb[0].mxu0
      %1989 = vmatprep.mubr.f32.mxu0 0.0
      %1990 = vmatmul.mubr.f32.gmra.mrb[0].mxu0 %v638
      %v1991 = vpop.f32.mrb[0].mxu0
      %v1992 = vadd.f32 %v337, %v1991
      %v1993 = vpop.f32.mrb[0].mxu0
      %1994 = vmatprep.mubr.f32.mxu0 0.0
      %1995 = vmatmul.mubr.f32.gmra.mrb[0].mxu0 %v641
      %v1996 = vpop.f32.mrb[0].mxu0
      %v1997 = vadd.f32 %v337, %v1996
      %v1998 = vpop.f32.mrb[0].mxu0
      %1999 = vmatprep.mubr.f32.mxu0 0.0
      %2000 = vmatmul.mubr.f32.gmra.mrb[0].mxu0 %v644
      %v2001 = vpop.f32.mrb[0].mxu0
      %v2002 = vadd.f32 %v337, %v2001
      %v2003 = vpop.f32.mrb[0].mxu0
      %2004 = vmatprep.mubr.f32.mxu0 0.0
      %2005 = vmatmul.mubr.f32.gmra.mrb[0].mxu0 %v647
      %v2006 = vpop.f32.mrb[0].mxu0
      %v2007 = vadd.f32 %v337, %v2006
      %v2008 = vpop.f32.mrb[0].mxu0
      %2009 = vmatprep.mubr.f32.mxu0 0.0
      %2010 = vmatmul.mubr.f32.gmra.mrb[0].mxu0 %v650
      %v2011 = vpop.f32.mrb[0].mxu0
      %v2012 = vadd.f32 %v337, %v2011
      %v2013 = vpop.f32.mrb[0].mxu0
      %2014 = vmatprep.mubr.f32.mxu0 0.0
      %2015 = vmatmul.mubr.f32.gmra.mrb[0].mxu0 %v653
      %v2016 = vpop.f32.mrb[0].mxu0
      %v2017 = vadd.f32 %v337, %v2016
      %v2018 = vpop.f32.mrb[0].mxu0
      %2019 = vmatprep.mubr.f32.mxu0 0.0
      %2020 = vmatmul.mubr.f32.gmra.mrb[0].mxu0 %v656
      %v2021 = vpop.f32.mrb[0].mxu0
      %v2022 = vadd.f32 %v337, %v2021
      %v2023 = vpop.f32.mrb[0].mxu0
      %2024 = vmatprep.mubr.f32.mxu0 0.0
      %2025 = vmatmul.mubr.f32.gmra.mrb[0].mxu0 %v659
      %v2026 = vpop.f32.mrb[0].mxu0
      %v2027 = vadd.f32 %v337, %v2026
      %v2028 = vpop.f32.mrb[0].mxu0
      %2029 = vmatprep.mubr.f32.mxu0 0.0
      %2030 = vmatmul.mubr.f32.gmra.mrb[0].mxu0 %v662
      %v2031 = vpop.f32.mrb[0].mxu0
      %v2032 = vadd.f32 %v337, %v2031
      %v2033 = vpop.f32.mrb[0].mxu0
      %2034 = vmatprep.mubr.f32.mxu0 0.0
      %2035 = vmatmul.mubr.f32.gmra.mrb[0].mxu0 %v665
      %v2036 = vpop.f32.mrb[0].mxu0
      %v2037 = vadd.f32 %v337, %v2036
      %v2038 = vpop.f32.mrb[0].mxu0
      %2039 = vmatprep.mubr.f32.mxu0 0.0
      %2040 = vmatmul.mubr.f32.gmra.mrb[0].mxu0 %v668
      %v2041 = vpop.f32.mrb[0].mxu0
      %v2042 = vadd.f32 %v337, %v2041
      %v2043 = vpop.f32.mrb[0].mxu0
      %2044 = vmatprep.mubr.f32.mxu0 0.0
      %2045 = vmatmul.mubr.f32.gmra.mrb[0].mxu0 %v671
      %v2046 = vpop.f32.mrb[0].mxu0
      %v2047 = vadd.f32 %v337, %v2046
      %v2048 = vpop.f32.mrb[0].mxu0
      %2049 = vmatprep.mubr.f32.mxu0 0.0
      %2050 = vmatmul.mubr.f32.gmra.mrb[0].mxu0 %v674
      %v2051 = vpop.f32.mrb[0].mxu0
      %v2052 = vadd.f32 %v337, %v2051
      %v2053 = vpop.f32.mrb[0].mxu0
      %2054 = vmatprep.mubr.f32.mxu0 0.0
      %2055 = vmatmul.mubr.f32.gmra.mrb[0].mxu0 %v677
      %v2056 = vpop.f32.mrb[0].mxu0
      %v2057 = vadd.f32 %v337, %v2056
      %v2058 = vpop.f32.mrb[0].mxu0
      %2059 = vmatprep.mubr.f32.mxu0 0.0
      %2060 = vmatmul.mubr.f32.gmra.mrb[0].mxu0 %v680
      %v2061 = vpop.f32.mrb[0].mxu0
      %v2062 = vadd.f32 %v337, %v2061
      %v2063 = vpop.f32.mrb[0].mxu0
      %2064 = vmatprep.mubr.f32.mxu0 0.0
      %2065 = vmatmul.mubr.f32.gmra.mrb[0].mxu0 %v683
      %v2066 = vpop.f32.mrb[0].mxu0
      %v2067 = vadd.f32 %v337, %v2066
      %v2068 = vpop.f32.mrb[0].mxu0
      %2069 = vmatprep.mubr.f32.mxu0 0.0
      %2070 = vmatmul.mubr.f32.gmra.mrb[0].mxu0 %v686
      %v2071 = vpop.f32.mrb[0].mxu0
      %v2072 = vadd.f32 %v337, %v2071
      %v2073 = vpop.f32.mrb[0].mxu0
      %2074 = vmatprep.mubr.f32.mxu0 0.0
      %2075 = vmatmul.mubr.f32.gmra.mrb[0].mxu0 %v689
      %v2076 = vpop.f32.mrb[0].mxu0
      %v2077 = vadd.f32 %v337, %v2076
      %v2078 = vpop.f32.mrb[0].mxu0
      %2079 = vmatprep.mubr.f32.mxu0 0.0
      %2080 = vmatmul.mubr.f32.gmra.mrb[0].mxu0 %v692
      %v2081 = vpop.f32.mrb[0].mxu0
      %v2082 = vadd.f32 %v337, %v2081
      %v2083 = vpop.f32.mrb[0].mxu0
      %2084 = vmatprep.mubr.f32.mxu0 0.0
      %2085 = vmatmul.mubr.f32.gmra.mrb[0].mxu0 %v695
      %v2086 = vpop.f32.mrb[0].mxu0
      %v2087 = vadd.f32 %v337, %v2086
      %v2088 = vpop.f32.mrb[0].mxu0
      %2089 = vmatprep.mubr.f32.mxu0 0.0
      %2090 = vmatmul.mubr.f32.gmra.mrb[0].mxu0 %v698
      %v2091 = vpop.f32.mrb[0].mxu0
      %v2092 = vadd.f32 %v337, %v2091
      %v2093 = vpop.f32.mrb[0].mxu0
      %2094 = vmatprep.mubr.f32.mxu0 0.0
      %2095 = vmatmul.mubr.f32.gmra.mrb[0].mxu0 %v701
      %v2096 = vpop.f32.mrb[0].mxu0
      %v2097 = vadd.f32 %v337, %v2096
      %v2098 = vpop.f32.mrb[0].mxu0
      %2099 = vmatprep.mubr.f32.mxu0 0.0
      %2100 = vmatmul.mubr.f32.gmra.mrb[0].mxu0 %v704
      %v2101 = vpop.f32.mrb[0].mxu0
      %v2102 = vadd.f32 %v337, %v2101
      %v2103 = vpop.f32.mrb[0].mxu0
      %2104 = vmatprep.mubr.f32.mxu0 0.0
      %2105 = vmatmul.mubr.f32.gmra.mrb[0].mxu0 %v707
      %v2106 = vpop.f32.mrb[0].mxu0
      %v2107 = vadd.f32 %v337, %v2106
      %v2108 = vpop.f32.mrb[0].mxu0
      %2109 = vmatprep.mubr.f32.mxu0 0.0
      %2110 = vmatmul.mubr.f32.gmra.mrb[0].mxu0 %v710
      %v2111 = vpop.f32.mrb[0].mxu0
      %v2112 = vadd.f32 %v337, %v2111
      %v2113 = vpop.f32.mrb[0].mxu0
      %2114 = vmatprep.mubr.f32.mxu0 0.0
      %2115 = vmatmul.mubr.f32.gmra.mrb[0].mxu0 %v713
      %v2116 = vpop.f32.mrb[0].mxu0
      %v2117 = vadd.f32 %v337, %v2116
      %v2118 = vpop.f32.mrb[0].mxu0
      %2119 = vmatprep.mubr.f32.mxu0 0.0
      %2120 = vmatmul.mubr.f32.gmra.mrb[0].mxu0 %v716
      %v2121 = vpop.f32.mrb[0].mxu0
      %v2122 = vadd.f32 %v337, %v2121
      %v2123 = vpop.f32.mrb[0].mxu0
      %2124 = vmatprep.mubr.f32.mxu0 0.0
      %2125 = vmatmul.mubr.f32.gmra.mrb[0].mxu0 %v719
      %v2126 = vpop.f32.mrb[0].mxu0
      %v2127 = vadd.f32 %v337, %v2126
      %v2128 = vpop.f32.mrb[0].mxu0
      %2129 = vmatprep.mubr.f32.mxu0 0.0
      %2130 = vmatmul.mubr.f32.gmra.mrb[0].mxu0 %v722
      %v2131 = vpop.f32.mrb[0].mxu0
      %v2132 = vadd.f32 %v337, %v2131
      %v2133 = vpop.f32.mrb[0].mxu0
      %2134 = vdwg.mxu0
      %2135 = vst.msk [vmem:[%s201] sm:$0xff] %vm339, %v791
      %2136 = vst.msk [vmem:[%s201 + $0x8] sm:$0xff] %vm339, %v796
      %2137 = vst.msk [vmem:[%s201 + $0x10] sm:$0xff] %vm339, %v801
      %2138 = vst.msk [vmem:[%s201 + $0x18] sm:$0xff] %vm339, %v806
      %2139 = vst.msk [vmem:[%s201 + $0x40] sm:$0xff] %vm339, %v811
      %2140 = vst.msk [vmem:[%s201 + $0x48] sm:$0xff] %vm339, %v816
      %2141 = vst.msk [vmem:[%s201 + $0x50] sm:$0xff] %vm339, %v821
      %2142 = vst.msk [vmem:[%s201 + $0x58] sm:$0xff] %vm339, %v826
      %2143 = vst.msk [vmem:[%s201 + $0x80] sm:$0xff] %vm339, %v831
      %2144 = vst.msk [vmem:[%s201 + $0x88] sm:$0xff] %vm339, %v836
      %2145 = vst.msk [vmem:[%s201 + $0x90] sm:$0xff] %vm339, %v841
      %2146 = vst.msk [vmem:[%s201 + $0x98] sm:$0xff] %vm339, %v846
      %2147 = vst.msk [vmem:[%s201 + $0xc0] sm:$0xff] %vm339, %v851
      %2148 = vst.msk [vmem:[%s201 + $0xc8] sm:$0xff] %vm339, %v856
      %2149 = vst.msk [vmem:[%s201 + $0xd0] sm:$0xff] %vm339, %v861
      %2150 = vst.msk [vmem:[%s201 + $0xd8] sm:$0xff] %vm339, %v866
      %2151 = vst.msk [vmem:[%s201 + $0x100] sm:$0xff] %vm339, %v871
      %2152 = vst.msk [vmem:[%s201 + $0x108] sm:$0xff] %vm339, %v876
      %2153 = vst.msk [vmem:[%s201 + $0x110] sm:$0xff] %vm339, %v881
      %2154 = vst.msk [vmem:[%s201 + $0x118] sm:$0xff] %vm339, %v886
      %2155 = vst.msk [vmem:[%s201 + $0x140] sm:$0xff] %vm339, %v891
      %2156 = vst.msk [vmem:[%s201 + $0x148] sm:$0xff] %vm339, %v896
      %2157 = vst.msk [vmem:[%s201 + $0x150] sm:$0xff] %vm339, %v901
      %2158 = vst.msk [vmem:[%s201 + $0x158] sm:$0xff] %vm339, %v906
      %2159 = vst.msk [vmem:[%s201 + $0x180] sm:$0xff] %vm339, %v911
      %2160 = vst.msk [vmem:[%s201 + $0x188] sm:$0xff] %vm339, %v916
      %2161 = vst.msk [vmem:[%s201 + $0x190] sm:$0xff] %vm339, %v921
      %2162 = vst.msk [vmem:[%s201 + $0x198] sm:$0xff] %vm339, %v926
      %2163 = vst.msk [vmem:[%s201 + $0x1c0] sm:$0xff] %vm339, %v931
      %2164 = vst.msk [vmem:[%s201 + $0x1c8] sm:$0xff] %vm339, %v936
      %2165 = vst.msk [vmem:[%s201 + $0x1d0] sm:$0xff] %vm339, %v941
      %2166 = vst.msk [vmem:[%s201 + $0x1d8] sm:$0xff] %vm339, %v946
      %2167 = vst.msk [vmem:[%s201 + $0x200] sm:$0xff] %vm339, %v951
      %2168 = vst.msk [vmem:[%s201 + $0x208] sm:$0xff] %vm339, %v956
      %2169 = vst.msk [vmem:[%s201 + $0x210] sm:$0xff] %vm339, %v961
      %2170 = vst.msk [vmem:[%s201 + $0x218] sm:$0xff] %vm339, %v966
      %2171 = vst.msk [vmem:[%s201 + $0x240] sm:$0xff] %vm339, %v971
      %2172 = vst.msk [vmem:[%s201 + $0x248] sm:$0xff] %vm339, %v976
      %2173 = vst.msk [vmem:[%s201 + $0x250] sm:$0xff] %vm339, %v981
      %2174 = vst.msk [vmem:[%s201 + $0x258] sm:$0xff] %vm339, %v986
      %2175 = vst.msk [vmem:[%s201 + $0x280] sm:$0xff] %vm339, %v991
      %2176 = vst.msk [vmem:[%s201 + $0x288] sm:$0xff] %vm339, %v996
      %2177 = vst.msk [vmem:[%s201 + $0x290] sm:$0xff] %vm339, %v1001
      %2178 = vst.msk [vmem:[%s201 + $0x298] sm:$0xff] %vm339, %v1006
      %2179 = vst.msk [vmem:[%s201 + $0x2c0] sm:$0xff] %vm339, %v1011
      %2180 = vst.msk [vmem:[%s201 + $0x2c8] sm:$0xff] %vm339, %v1016
      %2181 = vst.msk [vmem:[%s201 + $0x2d0] sm:$0xff] %vm339, %v1021
      %2182 = vst.msk [vmem:[%s201 + $0x2d8] sm:$0xff] %vm339, %v1026
      %2183 = vst.msk [vmem:[%s201 + $0x300] sm:$0xff] %vm339, %v1031
      %2184 = vst.msk [vmem:[%s201 + $0x308] sm:$0xff] %vm339, %v1036
      %2185 = vst.msk [vmem:[%s201 + $0x310] sm:$0xff] %vm339, %v1041
      %2186 = vst.msk [vmem:[%s201 + $0x318] sm:$0xff] %vm339, %v1046
      %2187 = vst.msk [vmem:[%s201 + $0x340] sm:$0xff] %vm339, %v1051
      %2188 = vst.msk [vmem:[%s201 + $0x348] sm:$0xff] %vm339, %v1056
      %2189 = vst.msk [vmem:[%s201 + $0x350] sm:$0xff] %vm339, %v1061
      %2190 = vst.msk [vmem:[%s201 + $0x358] sm:$0xff] %vm339, %v1066
      %2191 = vst.msk [vmem:[%s201 + $0x380] sm:$0xff] %vm339, %v1071
      %2192 = vst.msk [vmem:[%s201 + $0x388] sm:$0xff] %vm339, %v1076
      %2193 = vst.msk [vmem:[%s201 + $0x390] sm:$0xff] %vm339, %v1081
      %2194 = vst.msk [vmem:[%s201 + $0x398] sm:$0xff] %vm339, %v1086
      %2195 = vst.msk [vmem:[%s201 + $0x3c0] sm:$0xff] %vm339, %v1091
      %2196 = vst.msk [vmem:[%s201 + $0x3c8] sm:$0xff] %vm339, %v1096
      %2197 = vst.msk [vmem:[%s201 + $0x3d0] sm:$0xff] %vm339, %v1101
      %2198 = vst.msk [vmem:[%s201 + $0x3d8] sm:$0xff] %vm339, %v1106
      %2199 = vst.msk [vmem:[%s201 + $0x400] sm:$0xff] %vm339, %v1111
      %2200 = vst.msk [vmem:[%s201 + $0x408] sm:$0xff] %vm339, %v1116
      %2201 = vst.msk [vmem:[%s201 + $0x410] sm:$0xff] %vm339, %v1121
      %2202 = vst.msk [vmem:[%s201 + $0x418] sm:$0xff] %vm339, %v1126
      %2203 = vst.msk [vmem:[%s201 + $0x440] sm:$0xff] %vm339, %v1131
      %2204 = vst.msk [vmem:[%s201 + $0x448] sm:$0xff] %vm339, %v1136
      %2205 = vst.msk [vmem:[%s201 + $0x450] sm:$0xff] %vm339, %v1141
      %2206 = vst.msk [vmem:[%s201 + $0x458] sm:$0xff] %vm339, %v1146
      %2207 = vst.msk [vmem:[%s201 + $0x480] sm:$0xff] %vm339, %v1151
      %2208 = vst.msk [vmem:[%s201 + $0x488] sm:$0xff] %vm339, %v1156
      %2209 = vst.msk [vmem:[%s201 + $0x490] sm:$0xff] %vm339, %v1161
      %2210 = vst.msk [vmem:[%s201 + $0x498] sm:$0xff] %vm339, %v1166
      %2211 = vst.msk [vmem:[%s201 + $0x4c0] sm:$0xff] %vm339, %v1171
      %2212 = vst.msk [vmem:[%s201 + $0x4c8] sm:$0xff] %vm339, %v1176
      %2213 = vst.msk [vmem:[%s201 + $0x4d0] sm:$0xff] %vm339, %v1181
      %2214 = vst.msk [vmem:[%s201 + $0x4d8] sm:$0xff] %vm339, %v1186
      %2215 = vst.msk [vmem:[%s201 + $0x500] sm:$0xff] %vm339, %v1191
      %2216 = vst.msk [vmem:[%s201 + $0x508] sm:$0xff] %vm339, %v1196
      %2217 = vst.msk [vmem:[%s201 + $0x510] sm:$0xff] %vm339, %v1201
      %2218 = vst.msk [vmem:[%s201 + $0x518] sm:$0xff] %vm339, %v1206
      %2219 = vst.msk [vmem:[%s201 + $0x540] sm:$0xff] %vm339, %v1211
      %2220 = vst.msk [vmem:[%s201 + $0x548] sm:$0xff] %vm339, %v1216
      %2221 = vst.msk [vmem:[%s201 + $0x550] sm:$0xff] %vm339, %v1221
      %2222 = vst.msk [vmem:[%s201 + $0x558] sm:$0xff] %vm339, %v1226
      %2223 = vst.msk [vmem:[%s201 + $0x580] sm:$0xff] %vm339, %v1231
      %2224 = vst.msk [vmem:[%s201 + $0x588] sm:$0xff] %vm339, %v1236
      %2225 = vst.msk [vmem:[%s201 + $0x590] sm:$0xff] %vm339, %v1241
      %2226 = vst.msk [vmem:[%s201 + $0x598] sm:$0xff] %vm339, %v1246
      %2227 = vst.msk [vmem:[%s201 + $0x5c0] sm:$0xff] %vm339, %v1251
      %2228 = vst.msk [vmem:[%s201 + $0x5c8] sm:$0xff] %vm339, %v1256
      %2229 = vst.msk [vmem:[%s201 + $0x5d0] sm:$0xff] %vm339, %v1261
      %2230 = vst.msk [vmem:[%s201 + $0x5d8] sm:$0xff] %vm339, %v1266
      %2231 = vst.msk [vmem:[%s201 + $0x600] sm:$0xff] %vm339, %v1271
      %2232 = vst.msk [vmem:[%s201 + $0x608] sm:$0xff] %vm339, %v1276
      %2233 = vst.msk [vmem:[%s201 + $0x610] sm:$0xff] %vm339, %v1281
      %2234 = vst.msk [vmem:[%s201 + $0x618] sm:$0xff] %vm339, %v1286
      %2235 = vst.msk [vmem:[%s201 + $0x640] sm:$0xff] %vm339, %v1291
      %2236 = vst.msk [vmem:[%s201 + $0x648] sm:$0xff] %vm339, %v1296
      %2237 = vst.msk [vmem:[%s201 + $0x650] sm:$0xff] %vm339, %v1301
      %2238 = vst.msk [vmem:[%s201 + $0x658] sm:$0xff] %vm339, %v1306
      %2239 = vst.msk [vmem:[%s201 + $0x680] sm:$0xff] %vm339, %v1311
      %2240 = vst.msk [vmem:[%s201 + $0x688] sm:$0xff] %vm339, %v1316
      %2241 = vst.msk [vmem:[%s201 + $0x690] sm:$0xff] %vm339, %v1321
      %2242 = vst.msk [vmem:[%s201 + $0x698] sm:$0xff] %vm339, %v1326
      %2243 = vst.msk [vmem:[%s201 + $0x6c0] sm:$0xff] %vm339, %v1331
      %2244 = vst.msk [vmem:[%s201 + $0x6c8] sm:$0xff] %vm339, %v1336
      %2245 = vst.msk [vmem:[%s201 + $0x6d0] sm:$0xff] %vm339, %v1341
      %2246 = vst.msk [vmem:[%s201 + $0x6d8] sm:$0xff] %vm339, %v1346
      %2247 = vst.msk [vmem:[%s201 + $0x700] sm:$0xff] %vm339, %v1351
      %2248 = vst.msk [vmem:[%s201 + $0x708] sm:$0xff] %vm339, %v1356
      %2249 = vst.msk [vmem:[%s201 + $0x710] sm:$0xff] %vm339, %v1361
      %2250 = vst.msk [vmem:[%s201 + $0x718] sm:$0xff] %vm339, %v1366
      %2251 = vst.msk [vmem:[%s201 + $0x740] sm:$0xff] %vm339, %v1371
      %2252 = vst.msk [vmem:[%s201 + $0x748] sm:$0xff] %vm339, %v1376
      %2253 = vst.msk [vmem:[%s201 + $0x750] sm:$0xff] %vm339, %v1381
      %2254 = vst.msk [vmem:[%s201 + $0x758] sm:$0xff] %vm339, %v1386
      %2255 = vst.msk [vmem:[%s201 + $0x780] sm:$0xff] %vm339, %v1391
      %2256 = vst.msk [vmem:[%s201 + $0x788] sm:$0xff] %vm339, %v1396
      %2257 = vst.msk [vmem:[%s201 + $0x790] sm:$0xff] %vm339, %v1401
      %2258 = vst.msk [vmem:[%s201 + $0x798] sm:$0xff] %vm339, %v1406
      %2259 = vst.msk [vmem:[%s201 + $0x7c0] sm:$0xff] %vm339, %v1411
      %2260 = vst.msk [vmem:[%s201 + $0x7c8] sm:$0xff] %vm339, %v1416
      %2261 = vst.msk [vmem:[%s201 + $0x7d0] sm:$0xff] %vm339, %v1421
      %2262 = vst.msk [vmem:[%s201 + $0x7d8] sm:$0xff] %vm339, %v1426
      %s2263 = scalar_lea.vmem %s201, 32
      %2264 = vst.msk [vmem:[%s2263] sm:$0xff] %vm339, %v1497
      %2265 = vst.msk [vmem:[%s2263 + $0x8] sm:$0xff] %vm339, %v1502
      %2266 = vst.msk [vmem:[%s2263 + $0x10] sm:$0xff] %vm339, %v1507
      %2267 = vst.msk [vmem:[%s2263 + $0x18] sm:$0xff] %vm339, %v1512
      %2268 = vst.msk [vmem:[%s2263 + $0x40] sm:$0xff] %vm339, %v1517
      %2269 = vst.msk [vmem:[%s2263 + $0x48] sm:$0xff] %vm339, %v1522
      %2270 = vst.msk [vmem:[%s2263 + $0x50] sm:$0xff] %vm339, %v1527
      %2271 = vst.msk [vmem:[%s2263 + $0x58] sm:$0xff] %vm339, %v1532
      %2272 = vst.msk [vmem:[%s2263 + $0x80] sm:$0xff] %vm339, %v1537
      %2273 = vst.msk [vmem:[%s2263 + $0x88] sm:$0xff] %vm339, %v1542
      %2274 = vst.msk [vmem:[%s2263 + $0x90] sm:$0xff] %vm339, %v1547
      %2275 = vst.msk [vmem:[%s2263 + $0x98] sm:$0xff] %vm339, %v1552
      %2276 = vst.msk [vmem:[%s2263 + $0xc0] sm:$0xff] %vm339, %v1557
      %2277 = vst.msk [vmem:[%s2263 + $0xc8] sm:$0xff] %vm339, %v1562
      %2278 = vst.msk [vmem:[%s2263 + $0xd0] sm:$0xff] %vm339, %v1567
      %2279 = vst.msk [vmem:[%s2263 + $0xd8] sm:$0xff] %vm339, %v1572
      %2280 = vst.msk [vmem:[%s2263 + $0x100] sm:$0xff] %vm339, %v1577
      %2281 = vst.msk [vmem:[%s2263 + $0x108] sm:$0xff] %vm339, %v1582
      %2282 = vst.msk [vmem:[%s2263 + $0x110] sm:$0xff] %vm339, %v1587
      %2283 = vst.msk [vmem:[%s2263 + $0x118] sm:$0xff] %vm339, %v1592
      %2284 = vst.msk [vmem:[%s2263 + $0x140] sm:$0xff] %vm339, %v1597
      %2285 = vst.msk [vmem:[%s2263 + $0x148] sm:$0xff] %vm339, %v1602
      %2286 = vst.msk [vmem:[%s2263 + $0x150] sm:$0xff] %vm339, %v1607
      %2287 = vst.msk [vmem:[%s2263 + $0x158] sm:$0xff] %vm339, %v1612
      %2288 = vst.msk [vmem:[%s2263 + $0x180] sm:$0xff] %vm339, %v1617
      %2289 = vst.msk [vmem:[%s2263 + $0x188] sm:$0xff] %vm339, %v1622
      %2290 = vst.msk [vmem:[%s2263 + $0x190] sm:$0xff] %vm339, %v1627
      %2291 = vst.msk [vmem:[%s2263 + $0x198] sm:$0xff] %vm339, %v1632
      %2292 = vst.msk [vmem:[%s2263 + $0x1c0] sm:$0xff] %vm339, %v1637
      %2293 = vst.msk [vmem:[%s2263 + $0x1c8] sm:$0xff] %vm339, %v1642
      %2294 = vst.msk [vmem:[%s2263 + $0x1d0] sm:$0xff] %vm339, %v1647
      %2295 = vst.msk [vmem:[%s2263 + $0x1d8] sm:$0xff] %vm339, %v1652
      %2296 = vst.msk [vmem:[%s2263 + $0x200] sm:$0xff] %vm339, %v1657
      %2297 = vst.msk [vmem:[%s2263 + $0x208] sm:$0xff] %vm339, %v1662
      %2298 = vst.msk [vmem:[%s2263 + $0x210] sm:$0xff] %vm339, %v1667
      %2299 = vst.msk [vmem:[%s2263 + $0x218] sm:$0xff] %vm339, %v1672
      %2300 = vst.msk [vmem:[%s2263 + $0x240] sm:$0xff] %vm339, %v1677
      %2301 = vst.msk [vmem:[%s2263 + $0x248] sm:$0xff] %vm339, %v1682
      %2302 = vst.msk [vmem:[%s2263 + $0x250] sm:$0xff] %vm339, %v1687
      %2303 = vst.msk [vmem:[%s2263 + $0x258] sm:$0xff] %vm339, %v1692
      %2304 = vst.msk [vmem:[%s2263 + $0x280] sm:$0xff] %vm339, %v1697
      %2305 = vst.msk [vmem:[%s2263 + $0x288] sm:$0xff] %vm339, %v1702
      %2306 = vst.msk [vmem:[%s2263 + $0x290] sm:$0xff] %vm339, %v1707
      %2307 = vst.msk [vmem:[%s2263 + $0x298] sm:$0xff] %vm339, %v1712
      %2308 = vst.msk [vmem:[%s2263 + $0x2c0] sm:$0xff] %vm339, %v1717
      %2309 = vst.msk [vmem:[%s2263 + $0x2c8] sm:$0xff] %vm339, %v1722
      %2310 = vst.msk [vmem:[%s2263 + $0x2d0] sm:$0xff] %vm339, %v1727
      %2311 = vst.msk [vmem:[%s2263 + $0x2d8] sm:$0xff] %vm339, %v1732
      %2312 = vst.msk [vmem:[%s2263 + $0x300] sm:$0xff] %vm339, %v1737
      %2313 = vst.msk [vmem:[%s2263 + $0x308] sm:$0xff] %vm339, %v1742
      %2314 = vst.msk [vmem:[%s2263 + $0x310] sm:$0xff] %vm339, %v1747
      %2315 = vst.msk [vmem:[%s2263 + $0x318] sm:$0xff] %vm339, %v1752
      %2316 = vst.msk [vmem:[%s2263 + $0x340] sm:$0xff] %vm339, %v1757
      %2317 = vst.msk [vmem:[%s2263 + $0x348] sm:$0xff] %vm339, %v1762
      %2318 = vst.msk [vmem:[%s2263 + $0x350] sm:$0xff] %vm339, %v1767
      %2319 = vst.msk [vmem:[%s2263 + $0x358] sm:$0xff] %vm339, %v1772
      %2320 = vst.msk [vmem:[%s2263 + $0x380] sm:$0xff] %vm339, %v1777
      %2321 = vst.msk [vmem:[%s2263 + $0x388] sm:$0xff] %vm339, %v1782
      %2322 = vst.msk [vmem:[%s2263 + $0x390] sm:$0xff] %vm339, %v1787
      %2323 = vst.msk [vmem:[%s2263 + $0x398] sm:$0xff] %vm339, %v1792
      %2324 = vst.msk [vmem:[%s2263 + $0x3c0] sm:$0xff] %vm339, %v1797
      %2325 = vst.msk [vmem:[%s2263 + $0x3c8] sm:$0xff] %vm339, %v1802
      %2326 = vst.msk [vmem:[%s2263 + $0x3d0] sm:$0xff] %vm339, %v1807
      %2327 = vst.msk [vmem:[%s2263 + $0x3d8] sm:$0xff] %vm339, %v1812
      %2328 = vst.msk [vmem:[%s2263 + $0x400] sm:$0xff] %vm339, %v1817
      %2329 = vst.msk [vmem:[%s2263 + $0x408] sm:$0xff] %vm339, %v1822
      %2330 = vst.msk [vmem:[%s2263 + $0x410] sm:$0xff] %vm339, %v1827
      %2331 = vst.msk [vmem:[%s2263 + $0x418] sm:$0xff] %vm339, %v1832
      %2332 = vst.msk [vmem:[%s2263 + $0x440] sm:$0xff] %vm339, %v1837
      %2333 = vst.msk [vmem:[%s2263 + $0x448] sm:$0xff] %vm339, %v1842
      %2334 = vst.msk [vmem:[%s2263 + $0x450] sm:$0xff] %vm339, %v1847
      %2335 = vst.msk [vmem:[%s2263 + $0x458] sm:$0xff] %vm339, %v1852
      %2336 = vst.msk [vmem:[%s2263 + $0x480] sm:$0xff] %vm339, %v1857
      %2337 = vst.msk [vmem:[%s2263 + $0x488] sm:$0xff] %vm339, %v1862
      %2338 = vst.msk [vmem:[%s2263 + $0x490] sm:$0xff] %vm339, %v1867
      %2339 = vst.msk [vmem:[%s2263 + $0x498] sm:$0xff] %vm339, %v1872
      %2340 = vst.msk [vmem:[%s2263 + $0x4c0] sm:$0xff] %vm339, %v1877
      %2341 = vst.msk [vmem:[%s2263 + $0x4c8] sm:$0xff] %vm339, %v1882
      %2342 = vst.msk [vmem:[%s2263 + $0x4d0] sm:$0xff] %vm339, %v1887
      %2343 = vst.msk [vmem:[%s2263 + $0x4d8] sm:$0xff] %vm339, %v1892
      %2344 = vst.msk [vmem:[%s2263 + $0x500] sm:$0xff] %vm339, %v1897
      %2345 = vst.msk [vmem:[%s2263 + $0x508] sm:$0xff] %vm339, %v1902
      %2346 = vst.msk [vmem:[%s2263 + $0x510] sm:$0xff] %vm339, %v1907
      %2347 = vst.msk [vmem:[%s2263 + $0x518] sm:$0xff] %vm339, %v1912
      %2348 = vst.msk [vmem:[%s2263 + $0x540] sm:$0xff] %vm339, %v1917
      %2349 = vst.msk [vmem:[%s2263 + $0x548] sm:$0xff] %vm339, %v1922
      %2350 = vst.msk [vmem:[%s2263 + $0x550] sm:$0xff] %vm339, %v1927
      %2351 = vst.msk [vmem:[%s2263 + $0x558] sm:$0xff] %vm339, %v1932
      %2352 = vst.msk [vmem:[%s2263 + $0x580] sm:$0xff] %vm339, %v1937
      %2353 = vst.msk [vmem:[%s2263 + $0x588] sm:$0xff] %vm339, %v1942
      %2354 = vst.msk [vmem:[%s2263 + $0x590] sm:$0xff] %vm339, %v1947
      %2355 = vst.msk [vmem:[%s2263 + $0x598] sm:$0xff] %vm339, %v1952
      %2356 = vst.msk [vmem:[%s2263 + $0x5c0] sm:$0xff] %vm339, %v1957
      %2357 = vst.msk [vmem:[%s2263 + $0x5c8] sm:$0xff] %vm339, %v1962
      %2358 = vst.msk [vmem:[%s2263 + $0x5d0] sm:$0xff] %vm339, %v1967
      %2359 = vst.msk [vmem:[%s2263 + $0x5d8] sm:$0xff] %vm339, %v1972
      %2360 = vst.msk [vmem:[%s2263 + $0x600] sm:$0xff] %vm339, %v1977
      %2361 = vst.msk [vmem:[%s2263 + $0x608] sm:$0xff] %vm339, %v1982
      %2362 = vst.msk [vmem:[%s2263 + $0x610] sm:$0xff] %vm339, %v1987
      %2363 = vst.msk [vmem:[%s2263 + $0x618] sm:$0xff] %vm339, %v1992
      %2364 = vst.msk [vmem:[%s2263 + $0x640] sm:$0xff] %vm339, %v1997
      %2365 = vst.msk [vmem:[%s2263 + $0x648] sm:$0xff] %vm339, %v2002
      %2366 = vst.msk [vmem:[%s2263 + $0x650] sm:$0xff] %vm339, %v2007
      %2367 = vst.msk [vmem:[%s2263 + $0x658] sm:$0xff] %vm339, %v2012
      %2368 = vst.msk [vmem:[%s2263 + $0x680] sm:$0xff] %vm339, %v2017
      %2369 = vst.msk [vmem:[%s2263 + $0x688] sm:$0xff] %vm339, %v2022
      %2370 = vst.msk [vmem:[%s2263 + $0x690] sm:$0xff] %vm339, %v2027
      %2371 = vst.msk [vmem:[%s2263 + $0x698] sm:$0xff] %vm339, %v2032
      %2372 = vst.msk [vmem:[%s2263 + $0x6c0] sm:$0xff] %vm339, %v2037
      %2373 = vst.msk [vmem:[%s2263 + $0x6c8] sm:$0xff] %vm339, %v2042
      %2374 = vst.msk [vmem:[%s2263 + $0x6d0] sm:$0xff] %vm339, %v2047
      %2375 = vst.msk [vmem:[%s2263 + $0x6d8] sm:$0xff] %vm339, %v2052
      %2376 = vst.msk [vmem:[%s2263 + $0x700] sm:$0xff] %vm339, %v2057
      %2377 = vst.msk [vmem:[%s2263 + $0x708] sm:$0xff] %vm339, %v2062
      %2378 = vst.msk [vmem:[%s2263 + $0x710] sm:$0xff] %vm339, %v2067
      %2379 = vst.msk [vmem:[%s2263 + $0x718] sm:$0xff] %vm339, %v2072
      %2380 = vst.msk [vmem:[%s2263 + $0x740] sm:$0xff] %vm339, %v2077
      %2381 = vst.msk [vmem:[%s2263 + $0x748] sm:$0xff] %vm339, %v2082
      %2382 = vst.msk [vmem:[%s2263 + $0x750] sm:$0xff] %vm339, %v2087
      %2383 = vst.msk [vmem:[%s2263 + $0x758] sm:$0xff] %vm339, %v2092
      %2384 = vst.msk [vmem:[%s2263 + $0x780] sm:$0xff] %vm339, %v2097
      %2385 = vst.msk [vmem:[%s2263 + $0x788] sm:$0xff] %vm339, %v2102
      %2386 = vst.msk [vmem:[%s2263 + $0x790] sm:$0xff] %vm339, %v2107
      %2387 = vst.msk [vmem:[%s2263 + $0x798] sm:$0xff] %vm339, %v2112
      %2388 = vst.msk [vmem:[%s2263 + $0x7c0] sm:$0xff] %vm339, %v2117
      %2389 = vst.msk [vmem:[%s2263 + $0x7c8] sm:$0xff] %vm339, %v2122
      %2390 = vst.msk [vmem:[%s2263 + $0x7d0] sm:$0xff] %vm339, %v2127
      %2391 = vst.msk [vmem:[%s2263 + $0x7d8] sm:$0xff] %vm339, %v2132
      %s2392 = smul.u32 32, %s15
      %p2393 = scmp.lt.s32.totalorder %s2392, 63
      %s2394 = scalar_select %p2393, %s2392, 63
      %s2395 = smul.addr %s2394, 8
      %s2396 = smul.addr %s2395, 8
      %s2397 = scalar_lea.vmem %s4, %s2396
      // Predicated region
      $region37: #{upsampling_forward.1} parent=35 // pred_check
        %p2398 = pneg %p122
      $region38: #{upsampling_forward.1} parent=35 // pred_check_branch
        %2400 = sbr.rel (%p2398) target = $region40
      $region39: #{upsampling_forward.1} parent=35 // pred_region
        %s2401 = smul.u32 32, %s15
      $region40: #{upsampling_forward.1} parent=35 // pred_fallthru
        _
    $region36: #{upsampling_forward.1} parent=5 // pred_fallthru
      _
    %p2402 = scmp.le.s32.totalorder 2, %s10
    // Predicated region
    $region41: #{upsampling_forward.1} parent=5 // pred_check
      %p2403 = pneg %p2402
    $region42: #{upsampling_forward.1} parent=5 // pred_check_branch
      %2405 = sbr.rel (%p2403) target = $region44
    $region43: #{upsampling_forward.1} parent=5 // pred_region
      %s2406 = ssub.s32 %s10, 2
      // Predicated region
      $region45: #{upsampling_forward.1} parent=43 // pred_check
        %p2407 = pneg %p128
      $region46: #{upsampling_forward.1} parent=43 // pred_check_branch
        %2409 = sbr.rel (%p2407) target = $region48
      $region47: #{upsampling_forward.1} parent=43 // pred_region
        %s2410 = smul.u32 32, %s16
        %p2411 = scmp.lt.s32.totalorder %s2410, 63
        %s2412 = scalar_select %p2411, %s2410, 63
        %s2413 = smul.addr %s2412, 8
        %s2414 = smul.addr %s2413, 8
        %s2415 = scalar_lea.vmem %s4, %s2414
      $region48: #{upsampling_forward.1} parent=43 // pred_fallthru
        _
    $region44: #{upsampling_forward.1} parent=5 // pred_fallthru
      _
  $region6: #{upsampling_forward.1} parent=0 // loop_footer
    %s14 = sadd.s32 1, %s10
  $region7: #{upsampling_forward.1} parent=0 // loop_footer_branch
    %9 = sbr.rel target = $region3
  $region8: #{upsampling_forward.1} parent=0 // loop_exit
    _

</llo_original>
